<compile_context>
chip_gen: v6e
topology: v6e:2x2x1
jax: 0.10.0
libtpu: 0.0.40
codegen_flags: <defaults>
</compile_context>

<pallas_src>
import functools

import jax
import jax.numpy as jnp
from jax.experimental import pallas as pl
from jax.experimental.pallas import tpu as pltpu

K = 7          # kernel_size of the SpatialAttention conv
P = K // 2     # padding = 3


def spatial_attention_kernel(x_ref, w_ref, o_ref,
                             sum_ref, max_ref, avgp_ref, maxp_ref,
                             *, H, W, Cb):
    # x_ref : (1, Cb, H, W) VMEM  -- unpadded channel block
    # w_ref : (2*K*K,) SMEM      -- conv taps, avg taps (pre-scaled by 1/C) first
    # o_ref : (1, 1, H, W) VMEM
    # sum_ref, max_ref : (H, W) f32 VMEM running channel sum / max
    # avgp_ref, maxp_ref : (H+2P, W+2P) f32 VMEM zero-padded maps
    c_idx = pl.program_id(1)
    nc = pl.num_programs(1)

    # --- fused single-pass reduction over this channel block (sum + max) ---
    x0 = x_ref[0, 0].astype(jnp.float32)
    blk_sum = x0
    blk_max = x0
    for i in range(1, Cb):                      # Cb is a small static int
        xi = x_ref[0, i].astype(jnp.float32)
        blk_sum = blk_sum + xi
        blk_max = jnp.maximum(blk_max, xi)

    @pl.when(c_idx == 0)
    def _init():
        sum_ref[...] = blk_sum
        max_ref[...] = blk_max

    @pl.when(c_idx > 0)
    def _accum():
        sum_ref[...] = sum_ref[...] + blk_sum
        max_ref[...] = jnp.maximum(max_ref[...], blk_max)

    # --- finalize: pad, 7x7 conv, sigmoid (only on the last channel block) ---
    @pl.when(c_idx == nc - 1)
    def _finalize():
        # Zero-pad the (sum, max) maps into scratch.  Full re-zero every step:
        # scratch persists across grid iterations, so the border must not carry
        # stale data from a previous batch element.
        avgp_ref[...] = jnp.zeros_like(avgp_ref)
        maxp_ref[...] = jnp.zeros_like(maxp_ref)
        avgp_ref[P:P + H, P:P + W] = sum_ref[...]   # sum; 1/C folded into taps
        maxp_ref[P:P + H, P:P + W] = max_ref[...]

        avg_p = avgp_ref[...]                        # (Hp, Wp)
        max_p = maxp_ref[...]

        acc = jnp.zeros((H, W), jnp.float32)
        for kw in range(K):
            # One lane-offset slice per kw per map, shared by all 7 kh taps.
            col_a = avg_p[:, kw:kw + W]              # (Hp, W)
            col_m = max_p[:, kw:kw + W]
            for kh in range(K):
                wa = w_ref[kh * K + kw]              # scalar from SMEM
                wm = w_ref[K * K + kh * K + kw]
                acc = acc + wa * col_a[kh:kh + H, :] + wm * col_m[kh:kh + H, :]

        o_ref[0, 0] = jax.nn.sigmoid(acc).astype(o_ref.dtype)


def _pick_channel_block(C, H, W, budget_bytes=8 * 1024 * 1024, max_unroll=32):
    """Largest divisor of C whose double-buffered f32 input block fits the budget."""
    per_ch = 2 * H * W * 4
    max_cb = max(1, min(max_unroll, budget_bytes // per_ch))
    cb = 1
    for d in range(1, C + 1):
        if C % d == 0 and d <= max_cb:
            cb = d
    return cb


def spatial_attention(x, weight):
    """x: (N, C, H, W) float32, weight: (1, 2, K, K) conv weight (no bias)."""
    N, C, H, W = x.shape
    Hp, Wp = H + 2 * P, W + 2 * P
    Cb = _pick_channel_block(C, H, W)
    nc = C // Cb

    # Fold the mean's 1/C into the avg-channel taps; flatten [avg taps, max taps]
    # to match the torch.cat([avg, max]) channel order.
    w_flat = jnp.concatenate([
        (weight[0, 0] / jnp.float32(C)).reshape(-1),
        weight[0, 1].reshape(-1),
    ]).astype(jnp.float32)

    # Rough VMEM need: double-buffered input/output blocks + scratch.
    need = 4 * (2 * Cb * H * W + 2 * H * W + 2 * H * W + 2 * Hp * Wp)
    vmem_limit = int(min(64 * 1024 * 1024, max(16 * 1024 * 1024, 2 * need)))

    kernel = functools.partial(spatial_attention_kernel, H=H, W=W, Cb=Cb)
    return pl.pallas_call(
        kernel,
        out_shape=jax.ShapeDtypeStruct((N, 1, H, W), x.dtype),
        grid_spec=pltpu.PrefetchScalarGridSpec(
            num_scalar_prefetch=0,
            grid=(N, nc),
            in_specs=[
                # unpadded channel block; no wrapper-side spatial padding of x
                pl.BlockSpec((1, Cb, H, W), lambda n, c: (n, c, 0, 0)),
                # tiny conv weight lives untiled in SMEM (cheap scalar reads)
                pl.BlockSpec(memory_space=pltpu.MemorySpace.SMEM),
            ],
            # same output block across the C axis (written on the last C step)
            out_specs=pl.BlockSpec((1, 1, H, W), lambda n, c: (n, 0, 0, 0)),
            scratch_shapes=[
                pltpu.VMEM((H, W), jnp.float32),      # running channel sum
                pltpu.VMEM((H, W), jnp.float32),      # running channel max
                pltpu.VMEM((Hp, Wp), jnp.float32),    # zero-padded avg map
                pltpu.VMEM((Hp, Wp), jnp.float32),    # zero-padded max map
            ],
        ),
        compiler_params=pltpu.CompilerParams(
            dimension_semantics=("parallel", "arbitrary"),
            vmem_limit_bytes=vmem_limit),
    )(x, w_flat)


def spatial_attention_reference(x, weight):
    """Plain-JAX reference mirroring the PyTorch forward exactly."""
    avg = jnp.mean(x, axis=1, keepdims=True)
    mx = jnp.max(x, axis=1, keepdims=True)
    x_out = jnp.concatenate([avg, mx], axis=1)           # (N, 2, H, W)
    y = jax.lax.conv_general_dilated(
        x_out, weight, window_strides=(1, 1),
        padding=[(P, P), (P, P)],
        dimension_numbers=("NCHW", "OIHW", "NCHW"))
    return jax.nn.sigmoid(y)


if __name__ == "__main__":
    key = jax.random.PRNGKey(0)
    k_x, k_w = jax.random.split(key)

    N, C, H, W = 2, 4, 16, 16
    x = jax.random.normal(k_x, (N, C, H, W), dtype=jnp.float32)
    # Deterministic synthetic conv weight, shape (out=1, in=2, K, K), no bias.
    weight = 0.1 * jax.random.normal(k_w, (1, 2, K, K), dtype=jnp.float32)

    out = jax.block_until_ready(spatial_attention(x, weight))
    ref = jax.block_until_ready(spatial_attention_reference(x, weight))

    assert out.shape == (N, 1, H, W)
    assert jnp.allclose(out, ref, atol=1e-5, rtol=1e-5), "mismatch vs reference"
    print("KERNEL_OK")
</pallas_src>

<mosaic_0001>
module attributes {stable_mosaic.version = 11 : i64} {
  func.func @spatial_attention_kernel(%arg0: i32, %arg1: i32, %arg2: memref<1x4x16x16xf32, #tpu.memory_space<vmem>>, %arg3: memref<98xf32, #tpu.memory_space<smem>>, %arg4: memref<1x1x16x16xf32, #tpu.memory_space<vmem>>, %arg5: memref<16x16xf32, #tpu.memory_space<vmem>>, %arg6: memref<16x16xf32, #tpu.memory_space<vmem>>, %arg7: memref<22x22xf32, #tpu.memory_space<vmem>>, %arg8: memref<22x22xf32, #tpu.memory_space<vmem>>) attributes {dimension_semantics = [#tpu.dimension_semantics<parallel>, #tpu.dimension_semantics<arbitrary>], iteration_bounds = array<i64: 2, 1>, scalar_prefetch = 0 : i64, scratch_operands = 4 : i64, tpu.core_type = #tpu.core_type<tc>, window_params = [{transform_indices = @transform_0, window_bounds = array<i64: 1, 4, 16, 16>}, {transform_indices = @transform_1, window_bounds = array<i64: 98>}, {transform_indices = @transform_2, window_bounds = array<i64: 1, 1, 16, 16>}]} {
    %c0 = arith.constant 0 : index
    %c0_0 = arith.constant 0 : index
    %c0_1 = arith.constant 0 : index
    %c0_2 = arith.constant 0 : index
    %0 = vector.load %arg2[%c0, %c0_0, %c0_1, %c0_2] : memref<1x4x16x16xf32, #tpu.memory_space<vmem>>, vector<1x1x16x16xf32>
    %1 = vector.shape_cast %0 : vector<1x1x16x16xf32> to vector<16x16xf32>
    %c0_3 = arith.constant 0 : index
    %c1 = arith.constant 1 : index
    %c0_4 = arith.constant 0 : index
    %c0_5 = arith.constant 0 : index
    %2 = vector.load %arg2[%c0_3, %c1, %c0_4, %c0_5] : memref<1x4x16x16xf32, #tpu.memory_space<vmem>>, vector<1x1x16x16xf32>
    %3 = vector.shape_cast %2 : vector<1x1x16x16xf32> to vector<16x16xf32>
    %4 = arith.addf %1, %3 : vector<16x16xf32>
    %5 = arith.maximumf %1, %3 : vector<16x16xf32>
    %c0_6 = arith.constant 0 : index
    %c2 = arith.constant 2 : index
    %c0_7 = arith.constant 0 : index
    %c0_8 = arith.constant 0 : index
    %6 = vector.load %arg2[%c0_6, %c2, %c0_7, %c0_8] : memref<1x4x16x16xf32, #tpu.memory_space<vmem>>, vector<1x1x16x16xf32>
    %7 = vector.shape_cast %6 : vector<1x1x16x16xf32> to vector<16x16xf32>
    %8 = arith.addf %4, %7 : vector<16x16xf32>
    %9 = arith.maximumf %5, %7 : vector<16x16xf32>
    %c0_9 = arith.constant 0 : index
    %c3 = arith.constant 3 : index
    %c0_10 = arith.constant 0 : index
    %c0_11 = arith.constant 0 : index
    %10 = vector.load %arg2[%c0_9, %c3, %c0_10, %c0_11] : memref<1x4x16x16xf32, #tpu.memory_space<vmem>>, vector<1x1x16x16xf32>
    %11 = vector.shape_cast %10 : vector<1x1x16x16xf32> to vector<16x16xf32>
    %12 = arith.addf %8, %11 : vector<16x16xf32>
    %13 = arith.maximumf %9, %11 : vector<16x16xf32>
    %c0_i32 = arith.constant 0 : i32
    %14 = arith.cmpi eq, %arg1, %c0_i32 : i32
    %15 = arith.extui %14 : i1 to i32
    %c0_i32_12 = arith.constant 0 : i32
    %16 = arith.cmpi ne, %15, %c0_i32_12 : i32
    scf.if %16 {
      %c0_17 = arith.constant 0 : index
      %c0_18 = arith.constant 0 : index
      %23 = vector.load %arg5[%c0_17, %c0_18] : memref<16x16xf32, #tpu.memory_space<vmem>>, vector<16x16xf32>
      tpu.vector_store %arg5[%c0_17, %c0_18], %12 {strides = array<i32>} : memref<16x16xf32, #tpu.memory_space<vmem>>, vector<16x16xf32>,
      %c0_19 = arith.constant 0 : index
      %c0_20 = arith.constant 0 : index
      %24 = vector.load %arg6[%c0_19, %c0_20] : memref<16x16xf32, #tpu.memory_space<vmem>>, vector<16x16xf32>
      tpu.vector_store %arg6[%c0_19, %c0_20], %13 {strides = array<i32>} : memref<16x16xf32, #tpu.memory_space<vmem>>, vector<16x16xf32>,
    } else {
    }
    %c0_i32_13 = arith.constant 0 : i32
    %17 = arith.cmpi sgt, %arg1, %c0_i32_13 : i32
    %18 = arith.extui %17 : i1 to i32
    %c0_i32_14 = arith.constant 0 : i32
    %19 = arith.cmpi ne, %18, %c0_i32_14 : i32
    scf.if %19 {
      %c0_17 = arith.constant 0 : index
      %c0_18 = arith.constant 0 : index
      %23 = vector.load %arg5[%c0_17, %c0_18] : memref<16x16xf32, #tpu.memory_space<vmem>>, vector<16x16xf32>
      %24 = arith.addf %23, %12 : vector<16x16xf32>
      %c0_19 = arith.constant 0 : index
      %c0_20 = arith.constant 0 : index
      %25 = vector.load %arg5[%c0_19, %c0_20] : memref<16x16xf32, #tpu.memory_space<vmem>>, vector<16x16xf32>
      tpu.vector_store %arg5[%c0_19, %c0_20], %24 {strides = array<i32>} : memref<16x16xf32, #tpu.memory_space<vmem>>, vector<16x16xf32>,
      %c0_21 = arith.constant 0 : index
      %c0_22 = arith.constant 0 : index
      %26 = vector.load %arg6[%c0_21, %c0_22] : memref<16x16xf32, #tpu.memory_space<vmem>>, vector<16x16xf32>
      %27 = arith.maximumf %26, %13 : vector<16x16xf32>
      %c0_23 = arith.constant 0 : index
      %c0_24 = arith.constant 0 : index
      %28 = vector.load %arg6[%c0_23, %c0_24] : memref<16x16xf32, #tpu.memory_space<vmem>>, vector<16x16xf32>
      tpu.vector_store %arg6[%c0_23, %c0_24], %27 {strides = array<i32>} : memref<16x16xf32, #tpu.memory_space<vmem>>, vector<16x16xf32>,
    } else {
    }
    %c0_i32_15 = arith.constant 0 : i32
    %20 = arith.cmpi eq, %arg1, %c0_i32_15 : i32
    %21 = arith.extui %20 : i1 to i32
    %c0_i32_16 = arith.constant 0 : i32
    %22 = arith.cmpi ne, %21, %c0_i32_16 : i32
    scf.if %22 {
      %cst = arith.constant 0.000000e+00 : f32
      %23 = vector.broadcast %cst : f32 to vector<22x22xf32>
      %c0_17 = arith.constant 0 : index
      %c0_18 = arith.constant 0 : index
      %24 = vector.load %arg7[%c0_17, %c0_18] : memref<22x22xf32, #tpu.memory_space<vmem>>, vector<22x22xf32>
      tpu.vector_store %arg7[%c0_17, %c0_18], %23 {strides = array<i32>} : memref<22x22xf32, #tpu.memory_space<vmem>>, vector<22x22xf32>,
      %cst_19 = arith.constant 0.000000e+00 : f32
      %25 = vector.broadcast %cst_19 : f32 to vector<22x22xf32>
      %c0_20 = arith.constant 0 : index
      %c0_21 = arith.constant 0 : index
      %26 = vector.load %arg8[%c0_20, %c0_21] : memref<22x22xf32, #tpu.memory_space<vmem>>, vector<22x22xf32>
      tpu.vector_store %arg8[%c0_20, %c0_21], %25 {strides = array<i32>} : memref<22x22xf32, #tpu.memory_space<vmem>>, vector<22x22xf32>,
      %c0_22 = arith.constant 0 : index
      %c0_23 = arith.constant 0 : index
      %27 = vector.load %arg5[%c0_22, %c0_23] : memref<16x16xf32, #tpu.memory_space<vmem>>, vector<16x16xf32>
      %c3_24 = arith.constant 3 : index
      %c3_25 = arith.constant 3 : index
      %28 = vector.load %arg7[%c3_24, %c3_25] : memref<22x22xf32, #tpu.memory_space<vmem>>, vector<16x16xf32>
      tpu.vector_store %arg7[%c3_24, %c3_25], %27 {strides = array<i32>} : memref<22x22xf32, #tpu.memory_space<vmem>>, vector<16x16xf32>,
      %c0_26 = arith.constant 0 : index
      %c0_27 = arith.constant 0 : index
      %29 = vector.load %arg6[%c0_26, %c0_27] : memref<16x16xf32, #tpu.memory_space<vmem>>, vector<16x16xf32>
      %c3_28 = arith.constant 3 : index
      %c3_29 = arith.constant 3 : index
      %30 = vector.load %arg8[%c3_28, %c3_29] : memref<22x22xf32, #tpu.memory_space<vmem>>, vector<16x16xf32>
      tpu.vector_store %arg8[%c3_28, %c3_29], %29 {strides = array<i32>} : memref<22x22xf32, #tpu.memory_space<vmem>>, vector<16x16xf32>,
      %c0_30 = arith.constant 0 : index
      %c0_31 = arith.constant 0 : index
      %31 = vector.load %arg7[%c0_30, %c0_31] : memref<22x22xf32, #tpu.memory_space<vmem>>, vector<22x22xf32>
      %c0_32 = arith.constant 0 : index
      %c0_33 = arith.constant 0 : index
      %32 = vector.load %arg8[%c0_32, %c0_33] : memref<22x22xf32, #tpu.memory_space<vmem>>, vector<22x22xf32>
      %cst_34 = arith.constant 0.000000e+00 : f32
      %33 = vector.broadcast %cst_34 : f32 to vector<16x16xf32>
      %34 = vector.extract_strided_slice %31 {offsets = [0, 0], sizes = [22, 16], strides = [1, 1]} : vector<22x22xf32> to vector<22x16xf32>
      %35 = vector.extract_strided_slice %32 {offsets = [0, 0], sizes = [22, 16], strides = [1, 1]} : vector<22x22xf32> to vector<22x16xf32>
      %c0_35 = arith.constant 0 : index
      %36 = memref.load %arg3[%c0_35] : memref<98xf32, #tpu.memory_space<smem>>
      %c49 = arith.constant 49 : index
      %37 = memref.load %arg3[%c49] : memref<98xf32, #tpu.memory_space<smem>>
      %38 = vector.extract_strided_slice %34 {offsets = [0, 0], sizes = [16, 16], strides = [1, 1]} : vector<22x16xf32> to vector<16x16xf32>
      %39 = vector.broadcast %36 : f32 to vector<16x16xf32>
      %40 = arith.mulf %39, %38 : vector<16x16xf32>
      %41 = arith.addf %33, %40 : vector<16x16xf32>
      %42 = vector.extract_strided_slice %35 {offsets = [0, 0], sizes = [16, 16], strides = [1, 1]} : vector<22x16xf32> to vector<16x16xf32>
      %43 = vector.broadcast %37 : f32 to vector<16x16xf32>
      %44 = arith.mulf %43, %42 : vector<16x16xf32>
      %45 = arith.addf %41, %44 : vector<16x16xf32>
      %c7 = arith.constant 7 : index
      %46 = memref.load %arg3[%c7] : memref<98xf32, #tpu.memory_space<smem>>
      %c56 = arith.constant 56 : index
      %47 = memref.load %arg3[%c56] : memref<98xf32, #tpu.memory_space<smem>>
      %48 = vector.extract_strided_slice %34 {offsets = [1, 0], sizes = [16, 16], strides = [1, 1]} : vector<22x16xf32> to vector<16x16xf32>
      %49 = vector.broadcast %46 : f32 to vector<16x16xf32>
      %50 = arith.mulf %49, %48 : vector<16x16xf32>
      %51 = arith.addf %45, %50 : vector<16x16xf32>
      %52 = vector.extract_strided_slice %35 {offsets = [1, 0], sizes = [16, 16], strides = [1, 1]} : vector<22x16xf32> to vector<16x16xf32>
      %53 = vector.broadcast %47 : f32 to vector<16x16xf32>
      %54 = arith.mulf %53, %52 : vector<16x16xf32>
      %55 = arith.addf %51, %54 : vector<16x16xf32>
      %c14 = arith.constant 14 : index
      %56 = memref.load %arg3[%c14] : memref<98xf32, #tpu.memory_space<smem>>
      %c63 = arith.constant 63 : index
      %57 = memref.load %arg3[%c63] : memref<98xf32, #tpu.memory_space<smem>>
      %58 = vector.extract_strided_slice %34 {offsets = [2, 0], sizes = [16, 16], strides = [1, 1]} : vector<22x16xf32> to vector<16x16xf32>
      %59 = vector.broadcast %56 : f32 to vector<16x16xf32>
      %60 = arith.mulf %59, %58 : vector<16x16xf32>
      %61 = arith.addf %55, %60 : vector<16x16xf32>
      %62 = vector.extract_strided_slice %35 {offsets = [2, 0], sizes = [16, 16], strides = [1, 1]} : vector<22x16xf32> to vector<16x16xf32>
      %63 = vector.broadcast %57 : f32 to vector<16x16xf32>
      %64 = arith.mulf %63, %62 : vector<16x16xf32>
      %65 = arith.addf %61, %64 : vector<16x16xf32>
      %c21 = arith.constant 21 : index
      %66 = memref.load %arg3[%c21] : memref<98xf32, #tpu.memory_space<smem>>
      %c70 = arith.constant 70 : index
      %67 = memref.load %arg3[%c70] : memref<98xf32, #tpu.memory_space<smem>>
      %68 = vector.extract_strided_slice %34 {offsets = [3, 0], sizes = [16, 16], strides = [1, 1]} : vector<22x16xf32> to vector<16x16xf32>
      %69 = vector.broadcast %66 : f32 to vector<16x16xf32>
      %70 = arith.mulf %69, %68 : vector<16x16xf32>
      %71 = arith.addf %65, %70 : vector<16x16xf32>
      %72 = vector.extract_strided_slice %35 {offsets = [3, 0], sizes = [16, 16], strides = [1, 1]} : vector<22x16xf32> to vector<16x16xf32>
      %73 = vector.broadcast %67 : f32 to vector<16x16xf32>
      %74 = arith.mulf %73, %72 : vector<16x16xf32>
      %75 = arith.addf %71, %74 : vector<16x16xf32>
      %c28 = arith.constant 28 : index
      %76 = memref.load %arg3[%c28] : memref<98xf32, #tpu.memory_space<smem>>
      %c77 = arith.constant 77 : index
      %77 = memref.load %arg3[%c77] : memref<98xf32, #tpu.memory_space<smem>>
      %78 = vector.extract_strided_slice %34 {offsets = [4, 0], sizes = [16, 16], strides = [1, 1]} : vector<22x16xf32> to vector<16x16xf32>
      %79 = vector.broadcast %76 : f32 to vector<16x16xf32>
      %80 = arith.mulf %79, %78 : vector<16x16xf32>
      %81 = arith.addf %75, %80 : vector<16x16xf32>
      %82 = vector.extract_strided_slice %35 {offsets = [4, 0], sizes = [16, 16], strides = [1, 1]} : vector<22x16xf32> to vector<16x16xf32>
      %83 = vector.broadcast %77 : f32 to vector<16x16xf32>
      %84 = arith.mulf %83, %82 : vector<16x16xf32>
      %85 = arith.addf %81, %84 : vector<16x16xf32>
      %c35 = arith.constant 35 : index
      %86 = memref.load %arg3[%c35] : memref<98xf32, #tpu.memory_space<smem>>
      %c84 = arith.constant 84 : index
      %87 = memref.load %arg3[%c84] : memref<98xf32, #tpu.memory_space<smem>>
      %88 = vector.extract_strided_slice %34 {offsets = [5, 0], sizes = [16, 16], strides = [1, 1]} : vector<22x16xf32> to vector<16x16xf32>
      %89 = vector.broadcast %86 : f32 to vector<16x16xf32>
      %90 = arith.mulf %89, %88 : vector<16x16xf32>
      %91 = arith.addf %85, %90 : vector<16x16xf32>
      %92 = vector.extract_strided_slice %35 {offsets = [5, 0], sizes = [16, 16], strides = [1, 1]} : vector<22x16xf32> to vector<16x16xf32>
      %93 = vector.broadcast %87 : f32 to vector<16x16xf32>
      %94 = arith.mulf %93, %92 : vector<16x16xf32>
      %95 = arith.addf %91, %94 : vector<16x16xf32>
      %c42 = arith.constant 42 : index
      %96 = memref.load %arg3[%c42] : memref<98xf32, #tpu.memory_space<smem>>
      %c91 = arith.constant 91 : index
      %97 = memref.load %arg3[%c91] : memref<98xf32, #tpu.memory_space<smem>>
      %98 = vector.extract_strided_slice %34 {offsets = [6, 0], sizes = [16, 16], strides = [1, 1]} : vector<22x16xf32> to vector<16x16xf32>
      %99 = vector.broadcast %96 : f32 to vector<16x16xf32>
      %100 = arith.mulf %99, %98 : vector<16x16xf32>
      %101 = arith.addf %95, %100 : vector<16x16xf32>
      %102 = vector.extract_strided_slice %35 {offsets = [6, 0], sizes = [16, 16], strides = [1, 1]} : vector<22x16xf32> to vector<16x16xf32>
      %103 = vector.broadcast %97 : f32 to vector<16x16xf32>
      %104 = arith.mulf %103, %102 : vector<16x16xf32>
      %105 = arith.addf %101, %104 : vector<16x16xf32>
      %106 = vector.extract_strided_slice %31 {offsets = [0, 1], sizes = [22, 16], strides = [1, 1]} : vector<22x22xf32> to vector<22x16xf32>
      %107 = vector.extract_strided_slice %32 {offsets = [0, 1], sizes = [22, 16], strides = [1, 1]} : vector<22x22xf32> to vector<22x16xf32>
      %c1_36 = arith.constant 1 : index
      %108 = memref.load %arg3[%c1_36] : memref<98xf32, #tpu.memory_space<smem>>
      %c50 = arith.constant 50 : index
      %109 = memref.load %arg3[%c50] : memref<98xf32, #tpu.memory_space<smem>>
      %110 = vector.extract_strided_slice %106 {offsets = [0, 0], sizes = [16, 16], strides = [1, 1]} : vector<22x16xf32> to vector<16x16xf32>
      %111 = vector.broadcast %108 : f32 to vector<16x16xf32>
      %112 = arith.mulf %111, %110 : vector<16x16xf32>
      %113 = arith.addf %105, %112 : vector<16x16xf32>
      %114 = vector.extract_strided_slice %107 {offsets = [0, 0], sizes = [16, 16], strides = [1, 1]} : vector<22x16xf32> to vector<16x16xf32>
      %115 = vector.broadcast %109 : f32 to vector<16x16xf32>
      %116 = arith.mulf %115, %114 : vector<16x16xf32>
      %117 = arith.addf %113, %116 : vector<16x16xf32>
      %c8 = arith.constant 8 : index
      %118 = memref.load %arg3[%c8] : memref<98xf32, #tpu.memory_space<smem>>
      %c57 = arith.constant 57 : index
      %119 = memref.load %arg3[%c57] : memref<98xf32, #tpu.memory_space<smem>>
      %120 = vector.extract_strided_slice %106 {offsets = [1, 0], sizes = [16, 16], strides = [1, 1]} : vector<22x16xf32> to vector<16x16xf32>
      %121 = vector.broadcast %118 : f32 to vector<16x16xf32>
      %122 = arith.mulf %121, %120 : vector<16x16xf32>
      %123 = arith.addf %117, %122 : vector<16x16xf32>
      %124 = vector.extract_strided_slice %107 {offsets = [1, 0], sizes = [16, 16], strides = [1, 1]} : vector<22x16xf32> to vector<16x16xf32>
      %125 = vector.broadcast %119 : f32 to vector<16x16xf32>
      %126 = arith.mulf %125, %124 : vector<16x16xf32>
      %127 = arith.addf %123, %126 : vector<16x16xf32>
      %c15 = arith.constant 15 : index
      %128 = memref.load %arg3[%c15] : memref<98xf32, #tpu.memory_space<smem>>
      %c64 = arith.constant 64 : index
      %129 = memref.load %arg3[%c64] : memref<98xf32, #tpu.memory_space<smem>>
      %130 = vector.extract_strided_slice %106 {offsets = [2, 0], sizes = [16, 16], strides = [1, 1]} : vector<22x16xf32> to vector<16x16xf32>
      %131 = vector.broadcast %128 : f32 to vector<16x16xf32>
      %132 = arith.mulf %131, %130 : vector<16x16xf32>
      %133 = arith.addf %127, %132 : vector<16x16xf32>
      %134 = vector.extract_strided_slice %107 {offsets = [2, 0], sizes = [16, 16], strides = [1, 1]} : vector<22x16xf32> to vector<16x16xf32>
      %135 = vector.broadcast %129 : f32 to vector<16x16xf32>
      %136 = arith.mulf %135, %134 : vector<16x16xf32>
      %137 = arith.addf %133, %136 : vector<16x16xf32>
      %c22 = arith.constant 22 : index
      %138 = memref.load %arg3[%c22] : memref<98xf32, #tpu.memory_space<smem>>
      %c71 = arith.constant 71 : index
      %139 = memref.load %arg3[%c71] : memref<98xf32, #tpu.memory_space<smem>>
      %140 = vector.extract_strided_slice %106 {offsets = [3, 0], sizes = [16, 16], strides = [1, 1]} : vector<22x16xf32> to vector<16x16xf32>
      %141 = vector.broadcast %138 : f32 to vector<16x16xf32>
      %142 = arith.mulf %141, %140 : vector<16x16xf32>
      %143 = arith.addf %137, %142 : vector<16x16xf32>
      %144 = vector.extract_strided_slice %107 {offsets = [3, 0], sizes = [16, 16], strides = [1, 1]} : vector<22x16xf32> to vector<16x16xf32>
      %145 = vector.broadcast %139 : f32 to vector<16x16xf32>
      %146 = arith.mulf %145, %144 : vector<16x16xf32>
      %147 = arith.addf %143, %146 : vector<16x16xf32>
      %c29 = arith.constant 29 : index
      %148 = memref.load %arg3[%c29] : memref<98xf32, #tpu.memory_space<smem>>
      %c78 = arith.constant 78 : index
      %149 = memref.load %arg3[%c78] : memref<98xf32, #tpu.memory_space<smem>>
      %150 = vector.extract_strided_slice %106 {offsets = [4, 0], sizes = [16, 16], strides = [1, 1]} : vector<22x16xf32> to vector<16x16xf32>
      %151 = vector.broadcast %148 : f32 to vector<16x16xf32>
      %152 = arith.mulf %151, %150 : vector<16x16xf32>
      %153 = arith.addf %147, %152 : vector<16x16xf32>
      %154 = vector.extract_strided_slice %107 {offsets = [4, 0], sizes = [16, 16], strides = [1, 1]} : vector<22x16xf32> to vector<16x16xf32>
      %155 = vector.broadcast %149 : f32 to vector<16x16xf32>
      %156 = arith.mulf %155, %154 : vector<16x16xf32>
      %157 = arith.addf %153, %156 : vector<16x16xf32>
      %c36 = arith.constant 36 : index
      %158 = memref.load %arg3[%c36] : memref<98xf32, #tpu.memory_space<smem>>
      %c85 = arith.constant 85 : index
      %159 = memref.load %arg3[%c85] : memref<98xf32, #tpu.memory_space<smem>>
      %160 = vector.extract_strided_slice %106 {offsets = [5, 0], sizes = [16, 16], strides = [1, 1]} : vector<22x16xf32> to vector<16x16xf32>
      %161 = vector.broadcast %158 : f32 to vector<16x16xf32>
      %162 = arith.mulf %161, %160 : vector<16x16xf32>
      %163 = arith.addf %157, %162 : vector<16x16xf32>
      %164 = vector.extract_strided_slice %107 {offsets = [5, 0], sizes = [16, 16], strides = [1, 1]} : vector<22x16xf32> to vector<16x16xf32>
      %165 = vector.broadcast %159 : f32 to vector<16x16xf32>
      %166 = arith.mulf %165, %164 : vector<16x16xf32>
      %167 = arith.addf %163, %166 : vector<16x16xf32>
      %c43 = arith.constant 43 : index
      %168 = memref.load %arg3[%c43] : memref<98xf32, #tpu.memory_space<smem>>
      %c92 = arith.constant 92 : index
      %169 = memref.load %arg3[%c92] : memref<98xf32, #tpu.memory_space<smem>>
      %170 = vector.extract_strided_slice %106 {offsets = [6, 0], sizes = [16, 16], strides = [1, 1]} : vector<22x16xf32> to vector<16x16xf32>
      %171 = vector.broadcast %168 : f32 to vector<16x16xf32>
      %172 = arith.mulf %171, %170 : vector<16x16xf32>
      %173 = arith.addf %167, %172 : vector<16x16xf32>
      %174 = vector.extract_strided_slice %107 {offsets = [6, 0], sizes = [16, 16], strides = [1, 1]} : vector<22x16xf32> to vector<16x16xf32>
      %175 = vector.broadcast %169 : f32 to vector<16x16xf32>
      %176 = arith.mulf %175, %174 : vector<16x16xf32>
      %177 = arith.addf %173, %176 : vector<16x16xf32>
      %178 = vector.extract_strided_slice %31 {offsets = [0, 2], sizes = [22, 16], strides = [1, 1]} : vector<22x22xf32> to vector<22x16xf32>
      %179 = vector.extract_strided_slice %32 {offsets = [0, 2], sizes = [22, 16], strides = [1, 1]} : vector<22x22xf32> to vector<22x16xf32>
      %c2_37 = arith.constant 2 : index
      %180 = memref.load %arg3[%c2_37] : memref<98xf32, #tpu.memory_space<smem>>
      %c51 = arith.constant 51 : index
      %181 = memref.load %arg3[%c51] : memref<98xf32, #tpu.memory_space<smem>>
      %182 = vector.extract_strided_slice %178 {offsets = [0, 0], sizes = [16, 16], strides = [1, 1]} : vector<22x16xf32> to vector<16x16xf32>
      %183 = vector.broadcast %180 : f32 to vector<16x16xf32>
      %184 = arith.mulf %183, %182 : vector<16x16xf32>
      %185 = arith.addf %177, %184 : vector<16x16xf32>
      %186 = vector.extract_strided_slice %179 {offsets = [0, 0], sizes = [16, 16], strides = [1, 1]} : vector<22x16xf32> to vector<16x16xf32>
      %187 = vector.broadcast %181 : f32 to vector<16x16xf32>
      %188 = arith.mulf %187, %186 : vector<16x16xf32>
      %189 = arith.addf %185, %188 : vector<16x16xf32>
      %c9 = arith.constant 9 : index
      %190 = memref.load %arg3[%c9] : memref<98xf32, #tpu.memory_space<smem>>
      %c58 = arith.constant 58 : index
      %191 = memref.load %arg3[%c58] : memref<98xf32, #tpu.memory_space<smem>>
      %192 = vector.extract_strided_slice %178 {offsets = [1, 0], sizes = [16, 16], strides = [1, 1]} : vector<22x16xf32> to vector<16x16xf32>
      %193 = vector.broadcast %190 : f32 to vector<16x16xf32>
      %194 = arith.mulf %193, %192 : vector<16x16xf32>
      %195 = arith.addf %189, %194 : vector<16x16xf32>
      %196 = vector.extract_strided_slice %179 {offsets = [1, 0], sizes = [16, 16], strides = [1, 1]} : vector<22x16xf32> to vector<16x16xf32>
      %197 = vector.broadcast %191 : f32 to vector<16x16xf32>
      %198 = arith.mulf %197, %196 : vector<16x16xf32>
      %199 = arith.addf %195, %198 : vector<16x16xf32>
      %c16 = arith.constant 16 : index
      %200 = memref.load %arg3[%c16] : memref<98xf32, #tpu.memory_space<smem>>
      %c65 = arith.constant 65 : index
      %201 = memref.load %arg3[%c65] : memref<98xf32, #tpu.memory_space<smem>>
      %202 = vector.extract_strided_slice %178 {offsets = [2, 0], sizes = [16, 16], strides = [1, 1]} : vector<22x16xf32> to vector<16x16xf32>
      %203 = vector.broadcast %200 : f32 to vector<16x16xf32>
      %204 = arith.mulf %203, %202 : vector<16x16xf32>
      %205 = arith.addf %199, %204 : vector<16x16xf32>
      %206 = vector.extract_strided_slice %179 {offsets = [2, 0], sizes = [16, 16], strides = [1, 1]} : vector<22x16xf32> to vector<16x16xf32>
      %207 = vector.broadcast %201 : f32 to vector<16x16xf32>
      %208 = arith.mulf %207, %206 : vector<16x16xf32>
      %209 = arith.addf %205, %208 : vector<16x16xf32>
      %c23 = arith.constant 23 : index
      %210 = memref.load %arg3[%c23] : memref<98xf32, #tpu.memory_space<smem>>
      %c72 = arith.constant 72 : index
      %211 = memref.load %arg3[%c72] : memref<98xf32, #tpu.memory_space<smem>>
      %212 = vector.extract_strided_slice %178 {offsets = [3, 0], sizes = [16, 16], strides = [1, 1]} : vector<22x16xf32> to vector<16x16xf32>
      %213 = vector.broadcast %210 : f32 to vector<16x16xf32>
      %214 = arith.mulf %213, %212 : vector<16x16xf32>
      %215 = arith.addf %209, %214 : vector<16x16xf32>
      %216 = vector.extract_strided_slice %179 {offsets = [3, 0], sizes = [16, 16], strides = [1, 1]} : vector<22x16xf32> to vector<16x16xf32>
      %217 = vector.broadcast %211 : f32 to vector<16x16xf32>
      %218 = arith.mulf %217, %216 : vector<16x16xf32>
      %219 = arith.addf %215, %218 : vector<16x16xf32>
      %c30 = arith.constant 30 : index
      %220 = memref.load %arg3[%c30] : memref<98xf32, #tpu.memory_space<smem>>
      %c79 = arith.constant 79 : index
      %221 = memref.load %arg3[%c79] : memref<98xf32, #tpu.memory_space<smem>>
      %222 = vector.extract_strided_slice %178 {offsets = [4, 0], sizes = [16, 16], strides = [1, 1]} : vector<22x16xf32> to vector<16x16xf32>
      %223 = vector.broadcast %220 : f32 to vector<16x16xf32>
      %224 = arith.mulf %223, %222 : vector<16x16xf32>
      %225 = arith.addf %219, %224 : vector<16x16xf32>
      %226 = vector.extract_strided_slice %179 {offsets = [4, 0], sizes = [16, 16], strides = [1, 1]} : vector<22x16xf32> to vector<16x16xf32>
      %227 = vector.broadcast %221 : f32 to vector<16x16xf32>
      %228 = arith.mulf %227, %226 : vector<16x16xf32>
      %229 = arith.addf %225, %228 : vector<16x16xf32>
      %c37 = arith.constant 37 : index
      %230 = memref.load %arg3[%c37] : memref<98xf32, #tpu.memory_space<smem>>
      %c86 = arith.constant 86 : index
      %231 = memref.load %arg3[%c86] : memref<98xf32, #tpu.memory_space<smem>>
      %232 = vector.extract_strided_slice %178 {offsets = [5, 0], sizes = [16, 16], strides = [1, 1]} : vector<22x16xf32> to vector<16x16xf32>
      %233 = vector.broadcast %230 : f32 to vector<16x16xf32>
      %234 = arith.mulf %233, %232 : vector<16x16xf32>
      %235 = arith.addf %229, %234 : vector<16x16xf32>
      %236 = vector.extract_strided_slice %179 {offsets = [5, 0], sizes = [16, 16], strides = [1, 1]} : vector<22x16xf32> to vector<16x16xf32>
      %237 = vector.broadcast %231 : f32 to vector<16x16xf32>
      %238 = arith.mulf %237, %236 : vector<16x16xf32>
      %239 = arith.addf %235, %238 : vector<16x16xf32>
      %c44 = arith.constant 44 : index
      %240 = memref.load %arg3[%c44] : memref<98xf32, #tpu.memory_space<smem>>
      %c93 = arith.constant 93 : index
      %241 = memref.load %arg3[%c93] : memref<98xf32, #tpu.memory_space<smem>>
      %242 = vector.extract_strided_slice %178 {offsets = [6, 0], sizes = [16, 16], strides = [1, 1]} : vector<22x16xf32> to vector<16x16xf32>
      %243 = vector.broadcast %240 : f32 to vector<16x16xf32>
      %244 = arith.mulf %243, %242 : vector<16x16xf32>
      %245 = arith.addf %239, %244 : vector<16x16xf32>
      %246 = vector.extract_strided_slice %179 {offsets = [6, 0], sizes = [16, 16], strides = [1, 1]} : vector<22x16xf32> to vector<16x16xf32>
      %247 = vector.broadcast %241 : f32 to vector<16x16xf32>
      %248 = arith.mulf %247, %246 : vector<16x16xf32>
      %249 = arith.addf %245, %248 : vector<16x16xf32>
      %250 = vector.extract_strided_slice %31 {offsets = [0, 3], sizes = [22, 16], strides = [1, 1]} : vector<22x22xf32> to vector<22x16xf32>
      %251 = vector.extract_strided_slice %32 {offsets = [0, 3], sizes = [22, 16], strides = [1, 1]} : vector<22x22xf32> to vector<22x16xf32>
      %c3_38 = arith.constant 3 : index
      %252 = memref.load %arg3[%c3_38] : memref<98xf32, #tpu.memory_space<smem>>
      %c52 = arith.constant 52 : index
      %253 = memref.load %arg3[%c52] : memref<98xf32, #tpu.memory_space<smem>>
      %254 = vector.extract_strided_slice %250 {offsets = [0, 0], sizes = [16, 16], strides = [1, 1]} : vector<22x16xf32> to vector<16x16xf32>
      %255 = vector.broadcast %252 : f32 to vector<16x16xf32>
      %256 = arith.mulf %255, %254 : vector<16x16xf32>
      %257 = arith.addf %249, %256 : vector<16x16xf32>
      %258 = vector.extract_strided_slice %251 {offsets = [0, 0], sizes = [16, 16], strides = [1, 1]} : vector<22x16xf32> to vector<16x16xf32>
      %259 = vector.broadcast %253 : f32 to vector<16x16xf32>
      %260 = arith.mulf %259, %258 : vector<16x16xf32>
      %261 = arith.addf %257, %260 : vector<16x16xf32>
      %c10 = arith.constant 10 : index
      %262 = memref.load %arg3[%c10] : memref<98xf32, #tpu.memory_space<smem>>
      %c59 = arith.constant 59 : index
      %263 = memref.load %arg3[%c59] : memref<98xf32, #tpu.memory_space<smem>>
      %264 = vector.extract_strided_slice %250 {offsets = [1, 0], sizes = [16, 16], strides = [1, 1]} : vector<22x16xf32> to vector<16x16xf32>
      %265 = vector.broadcast %262 : f32 to vector<16x16xf32>
      %266 = arith.mulf %265, %264 : vector<16x16xf32>
      %267 = arith.addf %261, %266 : vector<16x16xf32>
      %268 = vector.extract_strided_slice %251 {offsets = [1, 0], sizes = [16, 16], strides = [1, 1]} : vector<22x16xf32> to vector<16x16xf32>
      %269 = vector.broadcast %263 : f32 to vector<16x16xf32>
      %270 = arith.mulf %269, %268 : vector<16x16xf32>
      %271 = arith.addf %267, %270 : vector<16x16xf32>
      %c17 = arith.constant 17 : index
      %272 = memref.load %arg3[%c17] : memref<98xf32, #tpu.memory_space<smem>>
      %c66 = arith.constant 66 : index
      %273 = memref.load %arg3[%c66] : memref<98xf32, #tpu.memory_space<smem>>
      %274 = vector.extract_strided_slice %250 {offsets = [2, 0], sizes = [16, 16], strides = [1, 1]} : vector<22x16xf32> to vector<16x16xf32>
      %275 = vector.broadcast %272 : f32 to vector<16x16xf32>
      %276 = arith.mulf %275, %274 : vector<16x16xf32>
      %277 = arith.addf %271, %276 : vector<16x16xf32>
      %278 = vector.extract_strided_slice %251 {offsets = [2, 0], sizes = [16, 16], strides = [1, 1]} : vector<22x16xf32> to vector<16x16xf32>
      %279 = vector.broadcast %273 : f32 to vector<16x16xf32>
      %280 = arith.mulf %279, %278 : vector<16x16xf32>
      %281 = arith.addf %277, %280 : vector<16x16xf32>
      %c24 = arith.constant 24 : index
      %282 = memref.load %arg3[%c24] : memref<98xf32, #tpu.memory_space<smem>>
      %c73 = arith.constant 73 : index
      %283 = memref.load %arg3[%c73] : memref<98xf32, #tpu.memory_space<smem>>
      %284 = vector.extract_strided_slice %250 {offsets = [3, 0], sizes = [16, 16], strides = [1, 1]} : vector<22x16xf32> to vector<16x16xf32>
      %285 = vector.broadcast %282 : f32 to vector<16x16xf32>
      %286 = arith.mulf %285, %284 : vector<16x16xf32>
      %287 = arith.addf %281, %286 : vector<16x16xf32>
      %288 = vector.extract_strided_slice %251 {offsets = [3, 0], sizes = [16, 16], strides = [1, 1]} : vector<22x16xf32> to vector<16x16xf32>
      %289 = vector.broadcast %283 : f32 to vector<16x16xf32>
      %290 = arith.mulf %289, %288 : vector<16x16xf32>
      %291 = arith.addf %287, %290 : vector<16x16xf32>
      %c31 = arith.constant 31 : index
      %292 = memref.load %arg3[%c31] : memref<98xf32, #tpu.memory_space<smem>>
      %c80 = arith.constant 80 : index
      %293 = memref.load %arg3[%c80] : memref<98xf32, #tpu.memory_space<smem>>
      %294 = vector.extract_strided_slice %250 {offsets = [4, 0], sizes = [16, 16], strides = [1, 1]} : vector<22x16xf32> to vector<16x16xf32>
      %295 = vector.broadcast %292 : f32 to vector<16x16xf32>
      %296 = arith.mulf %295, %294 : vector<16x16xf32>
      %297 = arith.addf %291, %296 : vector<16x16xf32>
      %298 = vector.extract_strided_slice %251 {offsets = [4, 0], sizes = [16, 16], strides = [1, 1]} : vector<22x16xf32> to vector<16x16xf32>
      %299 = vector.broadcast %293 : f32 to vector<16x16xf32>
      %300 = arith.mulf %299, %298 : vector<16x16xf32>
      %301 = arith.addf %297, %300 : vector<16x16xf32>
      %c38 = arith.constant 38 : index
      %302 = memref.load %arg3[%c38] : memref<98xf32, #tpu.memory_space<smem>>
      %c87 = arith.constant 87 : index
      %303 = memref.load %arg3[%c87] : memref<98xf32, #tpu.memory_space<smem>>
      %304 = vector.extract_strided_slice %250 {offsets = [5, 0], sizes = [16, 16], strides = [1, 1]} : vector<22x16xf32> to vector<16x16xf32>
      %305 = vector.broadcast %302 : f32 to vector<16x16xf32>
      %306 = arith.mulf %305, %304 : vector<16x16xf32>
      %307 = arith.addf %301, %306 : vector<16x16xf32>
      %308 = vector.extract_strided_slice %251 {offsets = [5, 0], sizes = [16, 16], strides = [1, 1]} : vector<22x16xf32> to vector<16x16xf32>
      %309 = vector.broadcast %303 : f32 to vector<16x16xf32>
      %310 = arith.mulf %309, %308 : vector<16x16xf32>
      %311 = arith.addf %307, %310 : vector<16x16xf32>
      %c45 = arith.constant 45 : index
      %312 = memref.load %arg3[%c45] : memref<98xf32, #tpu.memory_space<smem>>
      %c94 = arith.constant 94 : index
      %313 = memref.load %arg3[%c94] : memref<98xf32, #tpu.memory_space<smem>>
      %314 = vector.extract_strided_slice %250 {offsets = [6, 0], sizes = [16, 16], strides = [1, 1]} : vector<22x16xf32> to vector<16x16xf32>
      %315 = vector.broadcast %312 : f32 to vector<16x16xf32>
      %316 = arith.mulf %315, %314 : vector<16x16xf32>
      %317 = arith.addf %311, %316 : vector<16x16xf32>
      %318 = vector.extract_strided_slice %251 {offsets = [6, 0], sizes = [16, 16], strides = [1, 1]} : vector<22x16xf32> to vector<16x16xf32>
      %319 = vector.broadcast %313 : f32 to vector<16x16xf32>
      %320 = arith.mulf %319, %318 : vector<16x16xf32>
      %321 = arith.addf %317, %320 : vector<16x16xf32>
      %322 = vector.extract_strided_slice %31 {offsets = [0, 4], sizes = [22, 16], strides = [1, 1]} : vector<22x22xf32> to vector<22x16xf32>
      %323 = vector.extract_strided_slice %32 {offsets = [0, 4], sizes = [22, 16], strides = [1, 1]} : vector<22x22xf32> to vector<22x16xf32>
      %c4 = arith.constant 4 : index
      %324 = memref.load %arg3[%c4] : memref<98xf32, #tpu.memory_space<smem>>
      %c53 = arith.constant 53 : index
      %325 = memref.load %arg3[%c53] : memref<98xf32, #tpu.memory_space<smem>>
      %326 = vector.extract_strided_slice %322 {offsets = [0, 0], sizes = [16, 16], strides = [1, 1]} : vector<22x16xf32> to vector<16x16xf32>
      %327 = vector.broadcast %324 : f32 to vector<16x16xf32>
      %328 = arith.mulf %327, %326 : vector<16x16xf32>
      %329 = arith.addf %321, %328 : vector<16x16xf32>
      %330 = vector.extract_strided_slice %323 {offsets = [0, 0], sizes = [16, 16], strides = [1, 1]} : vector<22x16xf32> to vector<16x16xf32>
      %331 = vector.broadcast %325 : f32 to vector<16x16xf32>
      %332 = arith.mulf %331, %330 : vector<16x16xf32>
      %333 = arith.addf %329, %332 : vector<16x16xf32>
      %c11 = arith.constant 11 : index
      %334 = memref.load %arg3[%c11] : memref<98xf32, #tpu.memory_space<smem>>
      %c60 = arith.constant 60 : index
      %335 = memref.load %arg3[%c60] : memref<98xf32, #tpu.memory_space<smem>>
      %336 = vector.extract_strided_slice %322 {offsets = [1, 0], sizes = [16, 16], strides = [1, 1]} : vector<22x16xf32> to vector<16x16xf32>
      %337 = vector.broadcast %334 : f32 to vector<16x16xf32>
      %338 = arith.mulf %337, %336 : vector<16x16xf32>
      %339 = arith.addf %333, %338 : vector<16x16xf32>
      %340 = vector.extract_strided_slice %323 {offsets = [1, 0], sizes = [16, 16], strides = [1, 1]} : vector<22x16xf32> to vector<16x16xf32>
      %341 = vector.broadcast %335 : f32 to vector<16x16xf32>
      %342 = arith.mulf %341, %340 : vector<16x16xf32>
      %343 = arith.addf %339, %342 : vector<16x16xf32>
      %c18 = arith.constant 18 : index
      %344 = memref.load %arg3[%c18] : memref<98xf32, #tpu.memory_space<smem>>
      %c67 = arith.constant 67 : index
      %345 = memref.load %arg3[%c67] : memref<98xf32, #tpu.memory_space<smem>>
      %346 = vector.extract_strided_slice %322 {offsets = [2, 0], sizes = [16, 16], strides = [1, 1]} : vector<22x16xf32> to vector<16x16xf32>
      %347 = vector.broadcast %344 : f32 to vector<16x16xf32>
      %348 = arith.mulf %347, %346 : vector<16x16xf32>
      %349 = arith.addf %343, %348 : vector<16x16xf32>
      %350 = vector.extract_strided_slice %323 {offsets = [2, 0], sizes = [16, 16], strides = [1, 1]} : vector<22x16xf32> to vector<16x16xf32>
      %351 = vector.broadcast %345 : f32 to vector<16x16xf32>
      %352 = arith.mulf %351, %350 : vector<16x16xf32>
      %353 = arith.addf %349, %352 : vector<16x16xf32>
      %c25 = arith.constant 25 : index
      %354 = memref.load %arg3[%c25] : memref<98xf32, #tpu.memory_space<smem>>
      %c74 = arith.constant 74 : index
      %355 = memref.load %arg3[%c74] : memref<98xf32, #tpu.memory_space<smem>>
      %356 = vector.extract_strided_slice %322 {offsets = [3, 0], sizes = [16, 16], strides = [1, 1]} : vector<22x16xf32> to vector<16x16xf32>
      %357 = vector.broadcast %354 : f32 to vector<16x16xf32>
      %358 = arith.mulf %357, %356 : vector<16x16xf32>
      %359 = arith.addf %353, %358 : vector<16x16xf32>
      %360 = vector.extract_strided_slice %323 {offsets = [3, 0], sizes = [16, 16], strides = [1, 1]} : vector<22x16xf32> to vector<16x16xf32>
      %361 = vector.broadcast %355 : f32 to vector<16x16xf32>
      %362 = arith.mulf %361, %360 : vector<16x16xf32>
      %363 = arith.addf %359, %362 : vector<16x16xf32>
      %c32 = arith.constant 32 : index
      %364 = memref.load %arg3[%c32] : memref<98xf32, #tpu.memory_space<smem>>
      %c81 = arith.constant 81 : index
      %365 = memref.load %arg3[%c81] : memref<98xf32, #tpu.memory_space<smem>>
      %366 = vector.extract_strided_slice %322 {offsets = [4, 0], sizes = [16, 16], strides = [1, 1]} : vector<22x16xf32> to vector<16x16xf32>
      %367 = vector.broadcast %364 : f32 to vector<16x16xf32>
      %368 = arith.mulf %367, %366 : vector<16x16xf32>
      %369 = arith.addf %363, %368 : vector<16x16xf32>
      %370 = vector.extract_strided_slice %323 {offsets = [4, 0], sizes = [16, 16], strides = [1, 1]} : vector<22x16xf32> to vector<16x16xf32>
      %371 = vector.broadcast %365 : f32 to vector<16x16xf32>
      %372 = arith.mulf %371, %370 : vector<16x16xf32>
      %373 = arith.addf %369, %372 : vector<16x16xf32>
      %c39 = arith.constant 39 : index
      %374 = memref.load %arg3[%c39] : memref<98xf32, #tpu.memory_space<smem>>
      %c88 = arith.constant 88 : index
      %375 = memref.load %arg3[%c88] : memref<98xf32, #tpu.memory_space<smem>>
      %376 = vector.extract_strided_slice %322 {offsets = [5, 0], sizes = [16, 16], strides = [1, 1]} : vector<22x16xf32> to vector<16x16xf32>
      %377 = vector.broadcast %374 : f32 to vector<16x16xf32>
      %378 = arith.mulf %377, %376 : vector<16x16xf32>
      %379 = arith.addf %373, %378 : vector<16x16xf32>
      %380 = vector.extract_strided_slice %323 {offsets = [5, 0], sizes = [16, 16], strides = [1, 1]} : vector<22x16xf32> to vector<16x16xf32>
      %381 = vector.broadcast %375 : f32 to vector<16x16xf32>
      %382 = arith.mulf %381, %380 : vector<16x16xf32>
      %383 = arith.addf %379, %382 : vector<16x16xf32>
      %c46 = arith.constant 46 : index
      %384 = memref.load %arg3[%c46] : memref<98xf32, #tpu.memory_space<smem>>
      %c95 = arith.constant 95 : index
      %385 = memref.load %arg3[%c95] : memref<98xf32, #tpu.memory_space<smem>>
      %386 = vector.extract_strided_slice %322 {offsets = [6, 0], sizes = [16, 16], strides = [1, 1]} : vector<22x16xf32> to vector<16x16xf32>
      %387 = vector.broadcast %384 : f32 to vector<16x16xf32>
      %388 = arith.mulf %387, %386 : vector<16x16xf32>
      %389 = arith.addf %383, %388 : vector<16x16xf32>
      %390 = vector.extract_strided_slice %323 {offsets = [6, 0], sizes = [16, 16], strides = [1, 1]} : vector<22x16xf32> to vector<16x16xf32>
      %391 = vector.broadcast %385 : f32 to vector<16x16xf32>
      %392 = arith.mulf %391, %390 : vector<16x16xf32>
      %393 = arith.addf %389, %392 : vector<16x16xf32>
      %394 = vector.extract_strided_slice %31 {offsets = [0, 5], sizes = [22, 16], strides = [1, 1]} : vector<22x22xf32> to vector<22x16xf32>
      %395 = vector.extract_strided_slice %32 {offsets = [0, 5], sizes = [22, 16], strides = [1, 1]} : vector<22x22xf32> to vector<22x16xf32>
      %c5 = arith.constant 5 : index
      %396 = memref.load %arg3[%c5] : memref<98xf32, #tpu.memory_space<smem>>
      %c54 = arith.constant 54 : index
      %397 = memref.load %arg3[%c54] : memref<98xf32, #tpu.memory_space<smem>>
      %398 = vector.extract_strided_slice %394 {offsets = [0, 0], sizes = [16, 16], strides = [1, 1]} : vector<22x16xf32> to vector<16x16xf32>
      %399 = vector.broadcast %396 : f32 to vector<16x16xf32>
      %400 = arith.mulf %399, %398 : vector<16x16xf32>
      %401 = arith.addf %393, %400 : vector<16x16xf32>
      %402 = vector.extract_strided_slice %395 {offsets = [0, 0], sizes = [16, 16], strides = [1, 1]} : vector<22x16xf32> to vector<16x16xf32>
      %403 = vector.broadcast %397 : f32 to vector<16x16xf32>
      %404 = arith.mulf %403, %402 : vector<16x16xf32>
      %405 = arith.addf %401, %404 : vector<16x16xf32>
      %c12 = arith.constant 12 : index
      %406 = memref.load %arg3[%c12] : memref<98xf32, #tpu.memory_space<smem>>
      %c61 = arith.constant 61 : index
      %407 = memref.load %arg3[%c61] : memref<98xf32, #tpu.memory_space<smem>>
      %408 = vector.extract_strided_slice %394 {offsets = [1, 0], sizes = [16, 16], strides = [1, 1]} : vector<22x16xf32> to vector<16x16xf32>
      %409 = vector.broadcast %406 : f32 to vector<16x16xf32>
      %410 = arith.mulf %409, %408 : vector<16x16xf32>
      %411 = arith.addf %405, %410 : vector<16x16xf32>
      %412 = vector.extract_strided_slice %395 {offsets = [1, 0], sizes = [16, 16], strides = [1, 1]} : vector<22x16xf32> to vector<16x16xf32>
      %413 = vector.broadcast %407 : f32 to vector<16x16xf32>
      %414 = arith.mulf %413, %412 : vector<16x16xf32>
      %415 = arith.addf %411, %414 : vector<16x16xf32>
      %c19 = arith.constant 19 : index
      %416 = memref.load %arg3[%c19] : memref<98xf32, #tpu.memory_space<smem>>
      %c68 = arith.constant 68 : index
      %417 = memref.load %arg3[%c68] : memref<98xf32, #tpu.memory_space<smem>>
      %418 = vector.extract_strided_slice %394 {offsets = [2, 0], sizes = [16, 16], strides = [1, 1]} : vector<22x16xf32> to vector<16x16xf32>
      %419 = vector.broadcast %416 : f32 to vector<16x16xf32>
      %420 = arith.mulf %419, %418 : vector<16x16xf32>
      %421 = arith.addf %415, %420 : vector<16x16xf32>
      %422 = vector.extract_strided_slice %395 {offsets = [2, 0], sizes = [16, 16], strides = [1, 1]} : vector<22x16xf32> to vector<16x16xf32>
      %423 = vector.broadcast %417 : f32 to vector<16x16xf32>
      %424 = arith.mulf %423, %422 : vector<16x16xf32>
      %425 = arith.addf %421, %424 : vector<16x16xf32>
      %c26 = arith.constant 26 : index
      %426 = memref.load %arg3[%c26] : memref<98xf32, #tpu.memory_space<smem>>
      %c75 = arith.constant 75 : index
      %427 = memref.load %arg3[%c75] : memref<98xf32, #tpu.memory_space<smem>>
      %428 = vector.extract_strided_slice %394 {offsets = [3, 0], sizes = [16, 16], strides = [1, 1]} : vector<22x16xf32> to vector<16x16xf32>
      %429 = vector.broadcast %426 : f32 to vector<16x16xf32>
      %430 = arith.mulf %429, %428 : vector<16x16xf32>
      %431 = arith.addf %425, %430 : vector<16x16xf32>
      %432 = vector.extract_strided_slice %395 {offsets = [3, 0], sizes = [16, 16], strides = [1, 1]} : vector<22x16xf32> to vector<16x16xf32>
      %433 = vector.broadcast %427 : f32 to vector<16x16xf32>
      %434 = arith.mulf %433, %432 : vector<16x16xf32>
      %435 = arith.addf %431, %434 : vector<16x16xf32>
      %c33 = arith.constant 33 : index
      %436 = memref.load %arg3[%c33] : memref<98xf32, #tpu.memory_space<smem>>
      %c82 = arith.constant 82 : index
      %437 = memref.load %arg3[%c82] : memref<98xf32, #tpu.memory_space<smem>>
      %438 = vector.extract_strided_slice %394 {offsets = [4, 0], sizes = [16, 16], strides = [1, 1]} : vector<22x16xf32> to vector<16x16xf32>
      %439 = vector.broadcast %436 : f32 to vector<16x16xf32>
      %440 = arith.mulf %439, %438 : vector<16x16xf32>
      %441 = arith.addf %435, %440 : vector<16x16xf32>
      %442 = vector.extract_strided_slice %395 {offsets = [4, 0], sizes = [16, 16], strides = [1, 1]} : vector<22x16xf32> to vector<16x16xf32>
      %443 = vector.broadcast %437 : f32 to vector<16x16xf32>
      %444 = arith.mulf %443, %442 : vector<16x16xf32>
      %445 = arith.addf %441, %444 : vector<16x16xf32>
      %c40 = arith.constant 40 : index
      %446 = memref.load %arg3[%c40] : memref<98xf32, #tpu.memory_space<smem>>
      %c89 = arith.constant 89 : index
      %447 = memref.load %arg3[%c89] : memref<98xf32, #tpu.memory_space<smem>>
      %448 = vector.extract_strided_slice %394 {offsets = [5, 0], sizes = [16, 16], strides = [1, 1]} : vector<22x16xf32> to vector<16x16xf32>
      %449 = vector.broadcast %446 : f32 to vector<16x16xf32>
      %450 = arith.mulf %449, %448 : vector<16x16xf32>
      %451 = arith.addf %445, %450 : vector<16x16xf32>
      %452 = vector.extract_strided_slice %395 {offsets = [5, 0], sizes = [16, 16], strides = [1, 1]} : vector<22x16xf32> to vector<16x16xf32>
      %453 = vector.broadcast %447 : f32 to vector<16x16xf32>
      %454 = arith.mulf %453, %452 : vector<16x16xf32>
      %455 = arith.addf %451, %454 : vector<16x16xf32>
      %c47 = arith.constant 47 : index
      %456 = memref.load %arg3[%c47] : memref<98xf32, #tpu.memory_space<smem>>
      %c96 = arith.constant 96 : index
      %457 = memref.load %arg3[%c96] : memref<98xf32, #tpu.memory_space<smem>>
      %458 = vector.extract_strided_slice %394 {offsets = [6, 0], sizes = [16, 16], strides = [1, 1]} : vector<22x16xf32> to vector<16x16xf32>
      %459 = vector.broadcast %456 : f32 to vector<16x16xf32>
      %460 = arith.mulf %459, %458 : vector<16x16xf32>
      %461 = arith.addf %455, %460 : vector<16x16xf32>
      %462 = vector.extract_strided_slice %395 {offsets = [6, 0], sizes = [16, 16], strides = [1, 1]} : vector<22x16xf32> to vector<16x16xf32>
      %463 = vector.broadcast %457 : f32 to vector<16x16xf32>
      %464 = arith.mulf %463, %462 : vector<16x16xf32>
      %465 = arith.addf %461, %464 : vector<16x16xf32>
      %466 = vector.extract_strided_slice %31 {offsets = [0, 6], sizes = [22, 16], strides = [1, 1]} : vector<22x22xf32> to vector<22x16xf32>
      %467 = vector.extract_strided_slice %32 {offsets = [0, 6], sizes = [22, 16], strides = [1, 1]} : vector<22x22xf32> to vector<22x16xf32>
      %c6 = arith.constant 6 : index
      %468 = memref.load %arg3[%c6] : memref<98xf32, #tpu.memory_space<smem>>
      %c55 = arith.constant 55 : index
      %469 = memref.load %arg3[%c55] : memref<98xf32, #tpu.memory_space<smem>>
      %470 = vector.extract_strided_slice %466 {offsets = [0, 0], sizes = [16, 16], strides = [1, 1]} : vector<22x16xf32> to vector<16x16xf32>
      %471 = vector.broadcast %468 : f32 to vector<16x16xf32>
      %472 = arith.mulf %471, %470 : vector<16x16xf32>
      %473 = arith.addf %465, %472 : vector<16x16xf32>
      %474 = vector.extract_strided_slice %467 {offsets = [0, 0], sizes = [16, 16], strides = [1, 1]} : vector<22x16xf32> to vector<16x16xf32>
      %475 = vector.broadcast %469 : f32 to vector<16x16xf32>
      %476 = arith.mulf %475, %474 : vector<16x16xf32>
      %477 = arith.addf %473, %476 : vector<16x16xf32>
      %c13 = arith.constant 13 : index
      %478 = memref.load %arg3[%c13] : memref<98xf32, #tpu.memory_space<smem>>
      %c62 = arith.constant 62 : index
      %479 = memref.load %arg3[%c62] : memref<98xf32, #tpu.memory_space<smem>>
      %480 = vector.extract_strided_slice %466 {offsets = [1, 0], sizes = [16, 16], strides = [1, 1]} : vector<22x16xf32> to vector<16x16xf32>
      %481 = vector.broadcast %478 : f32 to vector<16x16xf32>
      %482 = arith.mulf %481, %480 : vector<16x16xf32>
      %483 = arith.addf %477, %482 : vector<16x16xf32>
      %484 = vector.extract_strided_slice %467 {offsets = [1, 0], sizes = [16, 16], strides = [1, 1]} : vector<22x16xf32> to vector<16x16xf32>
      %485 = vector.broadcast %479 : f32 to vector<16x16xf32>
      %486 = arith.mulf %485, %484 : vector<16x16xf32>
      %487 = arith.addf %483, %486 : vector<16x16xf32>
      %c20 = arith.constant 20 : index
      %488 = memref.load %arg3[%c20] : memref<98xf32, #tpu.memory_space<smem>>
      %c69 = arith.constant 69 : index
      %489 = memref.load %arg3[%c69] : memref<98xf32, #tpu.memory_space<smem>>
      %490 = vector.extract_strided_slice %466 {offsets = [2, 0], sizes = [16, 16], strides = [1, 1]} : vector<22x16xf32> to vector<16x16xf32>
      %491 = vector.broadcast %488 : f32 to vector<16x16xf32>
      %492 = arith.mulf %491, %490 : vector<16x16xf32>
      %493 = arith.addf %487, %492 : vector<16x16xf32>
      %494 = vector.extract_strided_slice %467 {offsets = [2, 0], sizes = [16, 16], strides = [1, 1]} : vector<22x16xf32> to vector<16x16xf32>
      %495 = vector.broadcast %489 : f32 to vector<16x16xf32>
      %496 = arith.mulf %495, %494 : vector<16x16xf32>
      %497 = arith.addf %493, %496 : vector<16x16xf32>
      %c27 = arith.constant 27 : index
      %498 = memref.load %arg3[%c27] : memref<98xf32, #tpu.memory_space<smem>>
      %c76 = arith.constant 76 : index
      %499 = memref.load %arg3[%c76] : memref<98xf32, #tpu.memory_space<smem>>
      %500 = vector.extract_strided_slice %466 {offsets = [3, 0], sizes = [16, 16], strides = [1, 1]} : vector<22x16xf32> to vector<16x16xf32>
      %501 = vector.broadcast %498 : f32 to vector<16x16xf32>
      %502 = arith.mulf %501, %500 : vector<16x16xf32>
      %503 = arith.addf %497, %502 : vector<16x16xf32>
      %504 = vector.extract_strided_slice %467 {offsets = [3, 0], sizes = [16, 16], strides = [1, 1]} : vector<22x16xf32> to vector<16x16xf32>
      %505 = vector.broadcast %499 : f32 to vector<16x16xf32>
      %506 = arith.mulf %505, %504 : vector<16x16xf32>
      %507 = arith.addf %503, %506 : vector<16x16xf32>
      %c34 = arith.constant 34 : index
      %508 = memref.load %arg3[%c34] : memref<98xf32, #tpu.memory_space<smem>>
      %c83 = arith.constant 83 : index
      %509 = memref.load %arg3[%c83] : memref<98xf32, #tpu.memory_space<smem>>
      %510 = vector.extract_strided_slice %466 {offsets = [4, 0], sizes = [16, 16], strides = [1, 1]} : vector<22x16xf32> to vector<16x16xf32>
      %511 = vector.broadcast %508 : f32 to vector<16x16xf32>
      %512 = arith.mulf %511, %510 : vector<16x16xf32>
      %513 = arith.addf %507, %512 : vector<16x16xf32>
      %514 = vector.extract_strided_slice %467 {offsets = [4, 0], sizes = [16, 16], strides = [1, 1]} : vector<22x16xf32> to vector<16x16xf32>
      %515 = vector.broadcast %509 : f32 to vector<16x16xf32>
      %516 = arith.mulf %515, %514 : vector<16x16xf32>
      %517 = arith.addf %513, %516 : vector<16x16xf32>
      %c41 = arith.constant 41 : index
      %518 = memref.load %arg3[%c41] : memref<98xf32, #tpu.memory_space<smem>>
      %c90 = arith.constant 90 : index
      %519 = memref.load %arg3[%c90] : memref<98xf32, #tpu.memory_space<smem>>
      %520 = vector.extract_strided_slice %466 {offsets = [5, 0], sizes = [16, 16], strides = [1, 1]} : vector<22x16xf32> to vector<16x16xf32>
      %521 = vector.broadcast %518 : f32 to vector<16x16xf32>
      %522 = arith.mulf %521, %520 : vector<16x16xf32>
      %523 = arith.addf %517, %522 : vector<16x16xf32>
      %524 = vector.extract_strided_slice %467 {offsets = [5, 0], sizes = [16, 16], strides = [1, 1]} : vector<22x16xf32> to vector<16x16xf32>
      %525 = vector.broadcast %519 : f32 to vector<16x16xf32>
      %526 = arith.mulf %525, %524 : vector<16x16xf32>
      %527 = arith.addf %523, %526 : vector<16x16xf32>
      %c48 = arith.constant 48 : index
      %528 = memref.load %arg3[%c48] : memref<98xf32, #tpu.memory_space<smem>>
      %c97 = arith.constant 97 : index
      %529 = memref.load %arg3[%c97] : memref<98xf32, #tpu.memory_space<smem>>
      %530 = vector.extract_strided_slice %466 {offsets = [6, 0], sizes = [16, 16], strides = [1, 1]} : vector<22x16xf32> to vector<16x16xf32>
      %531 = vector.broadcast %528 : f32 to vector<16x16xf32>
      %532 = arith.mulf %531, %530 : vector<16x16xf32>
      %533 = arith.addf %527, %532 : vector<16x16xf32>
      %534 = vector.extract_strided_slice %467 {offsets = [6, 0], sizes = [16, 16], strides = [1, 1]} : vector<22x16xf32> to vector<16x16xf32>
      %535 = vector.broadcast %529 : f32 to vector<16x16xf32>
      %536 = arith.mulf %535, %534 : vector<16x16xf32>
      %537 = arith.addf %533, %536 : vector<16x16xf32>
      %538 = arith.negf %537 : vector<16x16xf32>
      %539 = math.exp %538 : vector<16x16xf32>
      %cst_39 = arith.constant 1.000000e+00 : f32
      %540 = vector.broadcast %cst_39 : f32 to vector<16x16xf32>
      %541 = arith.addf %540, %539 : vector<16x16xf32>
      %542 = arith.divf %540, %541 : vector<16x16xf32>
      %c0_40 = arith.constant 0 : index
      %c0_41 = arith.constant 0 : index
      %c0_42 = arith.constant 0 : index
      %c0_43 = arith.constant 0 : index
      %543 = vector.load %arg4[%c0_40, %c0_41, %c0_42, %c0_43] : memref<1x1x16x16xf32, #tpu.memory_space<vmem>>, vector<1x1x16x16xf32>
      %544 = vector.shape_cast %543 : vector<1x1x16x16xf32> to vector<16x16xf32>
      %545 = vector.shape_cast %542 : vector<16x16xf32> to vector<1x1x16x16xf32>
      tpu.vector_store %arg4[%c0_40, %c0_41, %c0_42, %c0_43], %545 {strides = array<i32>} : memref<1x1x16x16xf32, #tpu.memory_space<vmem>>, vector<1x1x16x16xf32>,
    } else {
    }
    return
  }
  func.func @transform_0(%arg0: i32, %arg1: i32) -> (i32, i32, i32, i32) {
    %c0_i32 = arith.constant 0 : i32
    %c0_i32_0 = arith.constant 0 : i32
    %c0_i32_1 = arith.constant 0 : i32
    return %arg0, %arg1, %c0_i32, %c0_i32_0 : i32, i32, i32, i32
  }
  func.func @transform_1(%arg0: i32, %arg1: i32) -> i32 {
    %c0_i32 = arith.constant 0 : i32
    %c0_i32_0 = arith.constant 0 : i32
    return %c0_i32 : i32
  }
  func.func @transform_2(%arg0: i32, %arg1: i32) -> (i32, i32, i32, i32) {
    %c0_i32 = arith.constant 0 : i32
    %c0_i32_0 = arith.constant 0 : i32
    %c0_i32_1 = arith.constant 0 : i32
    %c0_i32_2 = arith.constant 0 : i32
    return %arg0, %c0_i32, %c0_i32_0, %c0_i32_1 : i32, i32, i32, i32
  }
}

</mosaic_0001>

<llo_original>
// kernel: tpu_custom_call.1
$region0: #{tpu_custom_call.1}
  #allocation0 [shape = 'u32[]', space=smem, size = 0x4, offset = 0x4, fixed_abs, tag = 'smem constant byte address 0x4 - core index']
  #allocation1 [shape = 'u32[144,128]{1,0:T(1,128)}', space=vmem, size = 0x12000, scoped, tag = 'internal scratch']
  #allocation2 [shape = 'f32[16,16]{1,0:T(8,128)}', space=vmem, size = 0x2000, scoped, tag = 'scratch operand']
  #allocation3 [shape = 'f32[16,16]{1,0:T(8,128)}', space=vmem, size = 0x2000, scoped, tag = 'scratch operand']
  #allocation4 [shape = 'f32[22,22]{1,0:T(8,128)}', space=vmem, size = 0x3000, scoped, tag = 'scratch operand']
  #allocation5 [shape = 'f32[22,22]{1,0:T(8,128)}', space=vmem, size = 0x3000, scoped, tag = 'scratch operand']
  %s0 = inlined_call_operand.hbm [shape: f32[2,4,16,16], index: 0, kind: input, shape index: {}]
  %s1 = inlined_call_operand.vmem [shape: f32[98], index: 1, kind: input, shape index: {}]
  %s2 = inlined_call_operand.hbm [shape: f32[2,1,16,16], index: 2, kind: output, shape index: {}]
  %s3 = sld [smem:[#allocation0]]
  $region61: #{tpu_custom_call.1} parent=0
    _
  %s5 = ssub.s32 1, %s3
  %s6 = scalar_select 0, %s5, %s3
  $region1: #{tpu_custom_call.1} parent=0
    #allocation6 [shape = 'u8[65536]{0}', space=vmem, size = 0x10000, scoped, tag = 'input window, operand 0']
    #allocation7 [shape = 's32[2]{0}', space=sflag, size = 0x8, scoped, tag = 'scoped memory for tpu_custom_call.1']
    #allocation8 [shape = 's32[2]{0}', space=sflag, size = 0x8, scoped, tag = 'scoped memory for tpu_custom_call.1']
    #allocation9 [shape = 's32[2]{0}', space=sflag, size = 0x8, scoped, tag = 'scoped memory for tpu_custom_call.1']
    #allocation10 [shape = 'u8[512]{0}', space=smem, size = 0x200, scoped, tag = 'input window, operand 1, single buffered']
    #allocation11 [shape = 'u8[16384]{0}', space=vmem, size = 0x4000, scoped, tag = 'output window, operand 0']
    %7 = vsyncpa [#allocation7], 0
    %s8 = scalar_lea.sflag [#allocation7], 1
    %9 = vsyncpa %s8, 0
    %10 = vsyncpa [#allocation9], 0
    %11 = vsyncpa [#allocation8], 0
    %s12 = scalar_lea.sflag [#allocation8], 1
    %13 = vsyncpa %s12, 0
    loop: start=0, step=1, limit=4
    $region2: #{tpu_custom_call.1} parent=1 // loop_pre_header
      _
    $region3: #{tpu_custom_call.1} parent=1 // loop_header
      %s15 = sphi 0, %s19
      %p16 = scmp.ge.s32.totalorder %s15, 4
      %s22 = sphi 0, %s34
      %s23 = sphi 0, %s30
      %s24 = sphi 0, %s22
      %s25 = sphi 0, %s23
      %s26 = sphi 0, %s24
      %s27 = sphi 0, %s25
      %s39 = sphi 0, %s41
      %s42 = sphi 0, %s39
      %s43 = sphi 0, %s42
      %s59 = sphi 0, %s43
      %s63 = sphi 0, %s63
      %s65 = sphi 0, %s63
      %s66 = sphi 0, %s65
      %s80 = sphi 0, %s66
      %s86 = sphi 0, %s88
      %s89 = sphi 0, %s86
      %s90 = sphi 0, %s89
      %s106 = sphi 0, %s90
    $region4: #{tpu_custom_call.1} parent=1 // loop_header_branch
      %18 = sbr.rel (%p16) target = $region8
    $region5: #{tpu_custom_call.1} parent=1 // loop_body
      %s20 = ssub.s32 %s15, 1
      %s21 = ssub.s32 %s15, 2
      %s28 = sadd.s32 1, %s23
      %p29 = scmp.ge.s32.totalorder %s28, 1
      %s30 = scalar_select %p29, 0, %s28
      %s31 = sadd.s32 1, %s22
      %s32 = scalar_select %p29, %s31, %s22
      %p33 = scmp.ge.s32.totalorder %s32, 2
      %s34 = scalar_select %p33, 0, %s32
      %s35 = ssub.s32 %s22, %s34
      %s36 = ssub.s32 %s23, %s30
      %s37 = sor.u32 %s35, %s36
      %p38 = scmp.eq.s32.totalorder %s37, 0
      %s40 = sadd.s32 %s39, 1
      %s41 = scalar_select %p38, %s39, %s40
      %p44 = pneg %p38
      %p45 = scmp.eq.s32.totalorder %s15, 1
      %p46 = por %p44, %p45
      %p47 = scmp.ne.s32.totalorder %s39, %s42
      %p48 = scmp.eq.s32.totalorder %s15, 0
      %p49 = por %p47, %p48
      %p50 = scmp.ne.s32.totalorder %s39, %s42
      %p51 = scmp.eq.s32.totalorder %s20, 1
      %p52 = por %p50, %p51
      %p53 = scmp.ne.s32.totalorder %s42, %s43
      %p54 = scmp.eq.s32.totalorder %s20, 0
      %p55 = por %p53, %p54
      %p56 = scmp.ne.s32.totalorder %s42, %s43
      %p57 = scmp.eq.s32.totalorder %s21, 1
      %p58 = por %p56, %p57
      %p60 = scmp.ne.s32.totalorder %s43, %s59
      %p61 = scmp.eq.s32.totalorder %s21, 0
      %p62 = por %p60, %p61
      %s64 = sadd.s32 %s63, 1
      %p67 = scmp.eq.s32.totalorder %s15, 1
      %p68 = scmp.ne.s32.totalorder %s63, %s65
      %p69 = scmp.eq.s32.totalorder %s15, 0
      %p70 = por %p68, %p69
      %p71 = scmp.ne.s32.totalorder %s63, %s65
      %p72 = scmp.eq.s32.totalorder %s20, 1
      %p73 = por %p71, %p72
      %p74 = scmp.ne.s32.totalorder %s65, %s66
      %p75 = scmp.eq.s32.totalorder %s20, 0
      %p76 = por %p74, %p75
      %p77 = scmp.ne.s32.totalorder %s65, %s66
      %p78 = scmp.eq.s32.totalorder %s21, 1
      %p79 = por %p77, %p78
      %p81 = scmp.ne.s32.totalorder %s66, %s80
      %p82 = scmp.eq.s32.totalorder %s21, 0
      %p83 = por %p81, %p82
      %s84 = ssub.s32 %s22, %s34
      %p85 = scmp.eq.s32.totalorder %s84, 0
      %s87 = sadd.s32 %s86, 1
      %s88 = scalar_select %p85, %s86, %s87
      %p91 = pneg %p85
      %p92 = scmp.eq.s32.totalorder %s15, 1
      %p93 = por %p91, %p92
      %p94 = scmp.ne.s32.totalorder %s86, %s89
      %p95 = scmp.eq.s32.totalorder %s15, 0
      %p96 = por %p94, %p95
      %p97 = scmp.ne.s32.totalorder %s86, %s89
      %p98 = scmp.eq.s32.totalorder %s20, 1
      %p99 = por %p97, %p98
      %p100 = scmp.ne.s32.totalorder %s89, %s90
      %p101 = scmp.eq.s32.totalorder %s20, 0
      %p102 = por %p100, %p101
      %p103 = scmp.ne.s32.totalorder %s89, %s90
      %p104 = scmp.eq.s32.totalorder %s21, 1
      %p105 = por %p103, %p104
      %p107 = scmp.ne.s32.totalorder %s90, %s106
      %p108 = scmp.eq.s32.totalorder %s21, 0
      %p109 = por %p107, %p108
      %p110 = scmp.le.s32.totalorder 1, %s15
      %p111 = scmp.lt.s32.totalorder %s15, 3
      %p112 = pnand %p110, %p111
      %p113 = pneg %p112
      // Predicated region
      $region9: #{tpu_custom_call.1} parent=5 // pred_check
        _
      $region10: #{tpu_custom_call.1} parent=5 // pred_check_branch
        %115 = sbr.rel (%p112) target = $region12
      $region11: #{tpu_custom_call.1} parent=5 // pred_region
        %s116 = ssub.s32 %s15, 1
        // Predicated region
        $region13: #{tpu_custom_call.1} parent=11 // pred_check
          %p117 = pneg %p76
        $region14: #{tpu_custom_call.1} parent=11 // pred_check_branch
          %119 = sbr.rel (%p117) target = $region16
        $region15: #{tpu_custom_call.1} parent=11 // pred_region
          %s121 = ssub.s32 16, 16
          %122 = vsyncadd [#allocation9], %s121
          %s124 = sshll.u32 %s1, 4
          %s125 = int_to_ptr.vmem [resolvable:$true] %s124
          %127 = dma.vmem_to_smem %s125, 16, [#allocation10], [#allocation9]
        $region16: #{tpu_custom_call.1} parent=11 // pred_fallthru
          _
      $region12: #{tpu_custom_call.1} parent=5 // pred_fallthru
        _
      %p128 = scmp.lt.s32.totalorder %s15, 2
      // Predicated region
      $region17: #{tpu_custom_call.1} parent=5 // pred_check
        %p129 = pneg %p128
      $region18: #{tpu_custom_call.1} parent=5 // pred_check_branch
        %131 = sbr.rel (%p129) target = $region20
      $region19: #{tpu_custom_call.1} parent=5 // pred_region
        // Predicated region
        $region21: #{tpu_custom_call.1} parent=19 // pred_check
          %p132 = pneg %p49
        $region22: #{tpu_custom_call.1} parent=19 // pred_check_branch
          %134 = sbr.rel (%p132) target = $region24
        $region23: #{tpu_custom_call.1} parent=19 // pred_region
          %s135 = sand.u32 %s39, 1
          %s136 = scalar_lea.sflag [#allocation7], %s135
          %s137 = sand.u32 %s39, 1
          %s138 = smul.addr %s137, 64
          %s139 = scalar_lea.vmem [#allocation6], %s138
          %s140 = smul.u32 4, %s23
          %s142 = ssub.s32 1024, 1024
          %143 = vsyncadd %s136, %s142
          %s144 = smul.addr %s140, 2
          %s145 = smul.addr %s22, 8
          %s146 = sadd.s32 %s144, %s145
          %s147 = smul.addr %s146, 128
          %s148 = scalar_lea.hbm %s0, %s147
          %s149 = sshll.u32 %s139, 4
          %s150 = int_to_ptr.vmem [resolvable:$true] %s149
          %155 = dma.hbm_to_vmem [thread:$0]  %s148, 1024, %s150, %s136, 128, 128, 8
        $region24: #{tpu_custom_call.1} parent=19 // pred_fallthru
          _
      $region20: #{tpu_custom_call.1} parent=5 // pred_fallthru
        _
      %p156 = scmp.le.s32.totalorder 1, %s15
      %p157 = scmp.lt.s32.totalorder %s15, 3
      %p158 = pnand %p156, %p157
      %p159 = pneg %p158
      // Predicated region
      $region25: #{tpu_custom_call.1} parent=5 // pred_check
        _
      $region26: #{tpu_custom_call.1} parent=5 // pred_check_branch
        %161 = sbr.rel (%p158) target = $region28
      $region27: #{tpu_custom_call.1} parent=5 // pred_region
        %s162 = ssub.s32 %s15, 1
        %s163 = sand.u32 %s42, 1
        %s164 = scalar_lea.sflag [#allocation7], %s163
        %s165 = sand.u32 %s42, 1
        %s166 = smul.addr %s165, 64
        %s167 = scalar_lea.vmem [#allocation6], %s166
        // Predicated region
        $region29: #{tpu_custom_call.1} parent=27 // pred_check
          %p168 = pneg %p55
        $region30: #{tpu_custom_call.1} parent=27 // pred_check_branch
          %170 = sbr.rel (%p168) target = $region32
        $region31: #{tpu_custom_call.1} parent=27 // pred_region
          %171 = dma.done %s164, 1024
        $region32: #{tpu_custom_call.1} parent=27 // pred_fallthru
          _
        // Predicated region
        $region33: #{tpu_custom_call.1} parent=27 // pred_check
          %p172 = pneg %p76
        $region34: #{tpu_custom_call.1} parent=27 // pred_check_branch
          %174 = sbr.rel (%p172) target = $region36
        $region35: #{tpu_custom_call.1} parent=27 // pred_region
          %175 = dma.done [#allocation9], 16
        $region36: #{tpu_custom_call.1} parent=27 // pred_fallthru
          _
        %176 = sfence
        %s177 = sand.u32 %s42, 1
        %s178 = scalar_lea.sflag [#allocation7], %s177
        %s179 = sand.u32 %s42, 1
        %s180 = smul.addr %s179, 64
        %s181 = scalar_lea.vmem [#allocation6], %s180
        %p182 = pneg %p55
        %p183 = pneg %p52
        %p184 = pneg %p76
        %p185 = pneg %p73
        %p186 = pneg %p102
        %p187 = pneg %p99
        %s188 = sand.u32 %s89, 1
        %s189 = scalar_lea.sflag [#allocation8], %s188
        %s190 = sand.u32 %s89, 1
        %s191 = smul.addr %s190, 16
        %s192 = scalar_lea.vmem [#allocation11], %s191
        %s193 = smul.u32 4, %s25
        %v194 = vld [vmem:[%s167] sm:$0xff]
        %v195 = vld [vmem:[%s167 + $0x8] sm:$0xff]
        %s196 = scalar_lea.vmem %s167, 16 [#allocation6]
        %v197 = vld [vmem:[%s196] sm:$0xff]
        %v198 = vld [vmem:[%s196 + $0x8] sm:$0xff]
        %v199 = vadd.f32 %v194, %v197
        %v200 = vadd.f32 %v195, %v198
        %v201 = vmax.f32 %v194, %v197
        %v202 = vmax.f32 %v195, %v198
        %s203 = scalar_lea.vmem %s167, 32 [#allocation6]
        %v204 = vld [vmem:[%s203] sm:$0xff]
        %v205 = vld [vmem:[%s203 + $0x8] sm:$0xff]
        %v206 = vadd.f32 %v199, %v204
        %v207 = vadd.f32 %v200, %v205
        %v208 = vmax.f32 %v201, %v204
        %v209 = vmax.f32 %v202, %v205
        %s210 = scalar_lea.vmem %s167, 48 [#allocation6]
        %v211 = vld [vmem:[%s210] sm:$0xff]
        %v212 = vld [vmem:[%s210 + $0x8] sm:$0xff]
        %v213 = vadd.f32 %v206, %v211
        %v214 = vadd.f32 %v207, %v212
        %v215 = vmax.f32 %v208, %v211
        %v216 = vmax.f32 %v209, %v212
        %p217 = scmp.eq.s32.totalorder %s25, 0
        // Predicated region
        $region37: #{tpu_custom_call.1} parent=27 // pred_check
          %p218 = pneg %p217
        $region38: #{tpu_custom_call.1} parent=27 // pred_check_branch
          %220 = sbr.rel (%p218) target = $region40
        $region39: #{tpu_custom_call.1} parent=27 // pred_region
          %vm221 = vcmask 130048
          %222 = vst.msk [vmem:[#allocation2] sm:$0xff] %vm221, %v213
          %223 = vst.msk [vmem:[#allocation2 + $0x8] sm:$0xff] %vm221, %v214
          %224 = vst.msk [vmem:[#allocation3] sm:$0xff] %vm221, %v215
          %225 = vst.msk [vmem:[#allocation3 + $0x8] sm:$0xff] %vm221, %v216
        $region40: #{tpu_custom_call.1} parent=27 // pred_fallthru
          _
        %p226 = scmp.gt.s32.totalorder %s25, 0
        // Predicated region
        $region41: #{tpu_custom_call.1} parent=27 // pred_check
          %p227 = pneg %p226
        $region42: #{tpu_custom_call.1} parent=27 // pred_check_branch
          %229 = sbr.rel (%p227) target = $region44
        $region43: #{tpu_custom_call.1} parent=27 // pred_region
          %v230 = vld [vmem:[#allocation2] sm:$0xff]
          %v231 = vld [vmem:[#allocation2 + $0x8] sm:$0xff]
          %v232 = vadd.f32 %v230, %v213
          %v233 = vadd.f32 %v231, %v214
          %vm234 = vcmask 130048
          %235 = vst.msk [vmem:[#allocation2] sm:$0xff] %vm234, %v232
          %236 = vst.msk [vmem:[#allocation2 + $0x8] sm:$0xff] %vm234, %v233
          %v237 = vld [vmem:[#allocation3] sm:$0xff]
          %v238 = vld [vmem:[#allocation3 + $0x8] sm:$0xff]
          %v239 = vmax.f32 %v237, %v215
          %v240 = vmax.f32 %v238, %v216
          %241 = vst.msk [vmem:[#allocation3] sm:$0xff] %vm234, %v239
          %242 = vst.msk [vmem:[#allocation3 + $0x8] sm:$0xff] %vm234, %v240
        $region44: #{tpu_custom_call.1} parent=27 // pred_fallthru
          _
        // Predicated region
        $region45: #{tpu_custom_call.1} parent=27 // pred_check
          %p243 = pneg %p217
        $region46: #{tpu_custom_call.1} parent=27 // pred_check_branch
          %245 = sbr.rel (%p243) target = $region48
        $region47: #{tpu_custom_call.1} parent=27 // pred_region
          %vm246 = vcmask 179200
          %247 = vst.msk [vmem:[#allocation4] sm:$0xff] %vm246, 0.0
          %248 = vst.msk [vmem:[#allocation4 + $0x8] sm:$0xff] %vm246, 0.0
          %vm249 = vcmask 177152
          %250 = vst.msk [vmem:[#allocation4 + $0x10] sm:$0x3f] %vm249, 0.0
          %251 = vst.msk [vmem:[#allocation5] sm:$0xff] %vm246, 0.0
          %252 = vst.msk [vmem:[#allocation5 + $0x8] sm:$0xff] %vm246, 0.0
          %253 = vst.msk [vmem:[#allocation5 + $0x10] sm:$0x3f] %vm249, 0.0
          %v254 = vld [vmem:[#allocation2] sm:$0xff]
          %v255 = vld [vmem:[#allocation2 + $0x8] sm:$0xff]
          %258 = vrot.lane.b32.xlu0 %v254, 3
          %v259 = vpop.permute.xlu0 %258
          %260 = vrot.lane.b32.xlu0 %v255, 3
          %v261 = vpop.permute.xlu0 %260
          %vm264 = vcmask 154648
          %265 = vst.msk [vmem:[#allocation4 + $0x3] sm:$0xff] %vm264, %v259
          %266 = vst.msk [vmem:[#allocation4 + $0xb] sm:$0xff] %vm264, %v261
          %v267 = vld [vmem:[#allocation3] sm:$0xff]
          %v268 = vld [vmem:[#allocation3 + $0x8] sm:$0xff]
          %271 = vrot.lane.b32.xlu0 %v267, 3
          %v272 = vpop.permute.xlu0 %271
          %273 = vrot.lane.b32.xlu0 %v268, 3
          %v274 = vpop.permute.xlu0 %273
          %277 = vst.msk [vmem:[#allocation5 + $0x3] sm:$0xff] %vm264, %v272
          %278 = vst.msk [vmem:[#allocation5 + $0xb] sm:$0xff] %vm264, %v274
          %v279 = vld [vmem:[#allocation4] sm:$0xff]
          %v280 = vld [vmem:[#allocation4 + $0x8] sm:$0xff]
          %v281 = vld [vmem:[#allocation4 + $0x10] sm:$0x3f]
          %v282 = vld [vmem:[#allocation5] sm:$0xff]
          %v283 = vld [vmem:[#allocation5 + $0x8] sm:$0xff]
          %v284 = vld [vmem:[#allocation5 + $0x10] sm:$0x3f]
          %s285 = sld [smem:[#allocation10]]
          %s286 = sld [smem:[#allocation10 + $0x31]]
          %v287 = vstv %s285
          %v288 = vmul.f32 %v287, %v279
          %v289 = vmul.f32 %v287, %v280
          %v290 = vadd.f32 %v288, 0.0
          %v291 = vadd.f32 %v289, 0.0
          %v292 = vstv %s286
          %v293 = vmul.f32 %v292, %v282
          %v294 = vmul.f32 %v292, %v283
          %v295 = vadd.f32 %v290, %v293
          %v296 = vadd.f32 %v291, %v294
          %s297 = sld [smem:[#allocation10 + $0x7]]
          %s298 = sld [smem:[#allocation10 + $0x38]]
          %v299 = vstv %s297
          %v300 = vmul.f32 %v299, %v279
          %v301 = vmul.f32 %v299, %v280
          %v302 = vmul.f32 %v299, %v281
          %vm306 = vcmask 1046528
          %v307 = vrot.slane %v300, 1
          %v308 = vrot.slane %v301, 1
          %v309 = vsel %vm306, %v307, %v308
          %v310 = vrot.slane %v302, 1
          %v311 = vsel %vm306, %v308, %v310
          %v314 = vadd.f32 %v295, %v309
          %v315 = vadd.f32 %v296, %v311
          %v316 = vstv %s298
          %v317 = vmul.f32 %v316, %v282
          %v318 = vmul.f32 %v316, %v283
          %v319 = vmul.f32 %v316, %v284
          %v323 = vrot.slane %v317, 1
          %v324 = vrot.slane %v318, 1
          %v325 = vsel %vm306, %v323, %v324
          %v326 = vrot.slane %v319, 1
          %v327 = vsel %vm306, %v324, %v326
          %v330 = vadd.f32 %v314, %v325
          %v331 = vadd.f32 %v315, %v327
          %s332 = sld [smem:[#allocation10 + $0xe]]
          %s333 = sld [smem:[#allocation10 + $0x3f]]
          %v334 = vstv %s332
          %v335 = vmul.f32 %v334, %v279
          %v336 = vmul.f32 %v334, %v280
          %v337 = vmul.f32 %v334, %v281
          %vm341 = vcmask 1045504
          %v342 = vrot.slane %v335, 2
          %v343 = vrot.slane %v336, 2
          %v344 = vsel %vm341, %v342, %v343
          %v345 = vrot.slane %v337, 2
          %v346 = vsel %vm341, %v343, %v345
          %v349 = vadd.f32 %v330, %v344
          %v350 = vadd.f32 %v331, %v346
          %v351 = vstv %s333
          %v352 = vmul.f32 %v351, %v282
          %v353 = vmul.f32 %v351, %v283
          %v354 = vmul.f32 %v351, %v284
          %v358 = vrot.slane %v352, 2
          %v359 = vrot.slane %v353, 2
          %v360 = vsel %vm341, %v358, %v359
          %v361 = vrot.slane %v354, 2
          %v362 = vsel %vm341, %v359, %v361
          %v365 = vadd.f32 %v349, %v360
          %v366 = vadd.f32 %v350, %v362
          %s367 = sld [smem:[#allocation10 + $0x15]]
          %s368 = sld [smem:[#allocation10 + $0x46]]
          %v369 = vstv %s367
          %v370 = vmul.f32 %v369, %v279
          %v371 = vmul.f32 %v369, %v280
          %v372 = vmul.f32 %v369, %v281
          %vm376 = vcmask 1044480
          %v377 = vrot.slane %v370, 3
          %v378 = vrot.slane %v371, 3
          %v379 = vsel %vm376, %v377, %v378
          %v380 = vrot.slane %v372, 3
          %v381 = vsel %vm376, %v378, %v380
          %v384 = vadd.f32 %v365, %v379
          %v385 = vadd.f32 %v366, %v381
          %v386 = vstv %s368
          %v387 = vmul.f32 %v386, %v282
          %v388 = vmul.f32 %v386, %v283
          %v389 = vmul.f32 %v386, %v284
          %v393 = vrot.slane %v387, 3
          %v394 = vrot.slane %v388, 3
          %v395 = vsel %vm376, %v393, %v394
          %v396 = vrot.slane %v389, 3
          %v397 = vsel %vm376, %v394, %v396
          %v400 = vadd.f32 %v384, %v395
          %v401 = vadd.f32 %v385, %v397
          %s402 = sld [smem:[#allocation10 + $0x1c]]
          %s403 = sld [smem:[#allocation10 + $0x4d]]
          %v404 = vstv %s402
          %v405 = vmul.f32 %v404, %v279
          %v406 = vmul.f32 %v404, %v280
          %v407 = vmul.f32 %v404, %v281
          %vm411 = vcmask 1043456
          %v412 = vrot.slane %v405, 4
          %v413 = vrot.slane %v406, 4
          %v414 = vsel %vm411, %v412, %v413
          %v415 = vrot.slane %v407, 4
          %v416 = vsel %vm411, %v413, %v415
          %v419 = vadd.f32 %v400, %v414
          %v420 = vadd.f32 %v401, %v416
          %v421 = vstv %s403
          %v422 = vmul.f32 %v421, %v282
          %v423 = vmul.f32 %v421, %v283
          %v424 = vmul.f32 %v421, %v284
          %v428 = vrot.slane %v422, 4
          %v429 = vrot.slane %v423, 4
          %v430 = vsel %vm411, %v428, %v429
          %v431 = vrot.slane %v424, 4
          %v432 = vsel %vm411, %v429, %v431
          %v435 = vadd.f32 %v419, %v430
          %v436 = vadd.f32 %v420, %v432
          %s437 = sld [smem:[#allocation10 + $0x23]]
          %s438 = sld [smem:[#allocation10 + $0x54]]
          %v439 = vstv %s437
          %v440 = vmul.f32 %v439, %v279
          %v441 = vmul.f32 %v439, %v280
          %v442 = vmul.f32 %v439, %v281
          %vm446 = vcmask 1042432
          %v447 = vrot.slane %v440, 5
          %v448 = vrot.slane %v441, 5
          %v449 = vsel %vm446, %v447, %v448
          %v450 = vrot.slane %v442, 5
          %v451 = vsel %vm446, %v448, %v450
          %v454 = vadd.f32 %v435, %v449
          %v455 = vadd.f32 %v436, %v451
          %v456 = vstv %s438
          %v457 = vmul.f32 %v456, %v282
          %v458 = vmul.f32 %v456, %v283
          %v459 = vmul.f32 %v456, %v284
          %v463 = vrot.slane %v457, 5
          %v464 = vrot.slane %v458, 5
          %v465 = vsel %vm446, %v463, %v464
          %v466 = vrot.slane %v459, 5
          %v467 = vsel %vm446, %v464, %v466
          %v470 = vadd.f32 %v454, %v465
          %v471 = vadd.f32 %v455, %v467
          %s472 = sld [smem:[#allocation10 + $0x2a]]
          %s473 = sld [smem:[#allocation10 + $0x5b]]
          %v474 = vstv %s472
          %v475 = vmul.f32 %v474, %v279
          %v476 = vmul.f32 %v474, %v280
          %v477 = vmul.f32 %v474, %v281
          %vm481 = vcmask 1041408
          %v482 = vrot.slane %v475, 6
          %v483 = vrot.slane %v476, 6
          %v484 = vsel %vm481, %v482, %v483
          %v485 = vrot.slane %v477, 6
          %v486 = vsel %vm481, %v483, %v485
          %v489 = vadd.f32 %v470, %v484
          %v490 = vadd.f32 %v471, %v486
          %v491 = vstv %s473
          %v492 = vmul.f32 %v491, %v282
          %v493 = vmul.f32 %v491, %v283
          %v494 = vmul.f32 %v491, %v284
          %v498 = vrot.slane %v492, 6
          %v499 = vrot.slane %v493, 6
          %v500 = vsel %vm481, %v498, %v499
          %v501 = vrot.slane %v494, 6
          %v502 = vsel %vm481, %v499, %v501
          %v505 = vadd.f32 %v489, %v500
          %v506 = vadd.f32 %v490, %v502
          %s507 = sld [smem:[#allocation10 + $0x1]]
          %s508 = sld [smem:[#allocation10 + $0x32]]
          %v509 = vstv %s507
          %v510 = vmul.f32 %v509, %v279
          %v511 = vmul.f32 %v509, %v280
          %514 = vrot.lane.b32.xlu0 %v510, 127
          %v515 = vpop.permute.xlu0 %514
          %516 = vrot.lane.b32.xlu0 %v511, 127
          %v517 = vpop.permute.xlu0 %516
          %v520 = vadd.f32 %v505, %v515
          %v521 = vadd.f32 %v506, %v517
          %v522 = vstv %s508
          %v523 = vmul.f32 %v522, %v282
          %v524 = vmul.f32 %v522, %v283
          %527 = vrot.lane.b32.xlu0 %v523, 127
          %v528 = vpop.permute.xlu0 %527
          %529 = vrot.lane.b32.xlu0 %v524, 127
          %v530 = vpop.permute.xlu0 %529
          %v533 = vadd.f32 %v520, %v528
          %v534 = vadd.f32 %v521, %v530
          %s535 = sld [smem:[#allocation10 + $0x8]]
          %s536 = sld [smem:[#allocation10 + $0x39]]
          %v537 = vstv %s535
          %v538 = vmul.f32 %v537, %v279
          %v539 = vmul.f32 %v537, %v280
          %v540 = vmul.f32 %v537, %v281
          %v544 = vrot.slane %v538, 1
          %v545 = vrot.slane %v539, 1
          %v546 = vsel %vm306, %v544, %v545
          %v547 = vrot.slane %v540, 1
          %v548 = vsel %vm306, %v545, %v547
          %549 = vrot.lane.b32.xlu0 %v546, 127
          %v550 = vpop.permute.xlu0 %549
          %551 = vrot.lane.b32.xlu0 %v548, 127
          %v552 = vpop.permute.xlu0 %551
          %v555 = vadd.f32 %v533, %v550
          %v556 = vadd.f32 %v534, %v552
          %v557 = vstv %s536
          %v558 = vmul.f32 %v557, %v282
          %v559 = vmul.f32 %v557, %v283
          %v560 = vmul.f32 %v557, %v284
          %v564 = vrot.slane %v558, 1
          %v565 = vrot.slane %v559, 1
          %v566 = vsel %vm306, %v564, %v565
          %v567 = vrot.slane %v560, 1
          %v568 = vsel %vm306, %v565, %v567
          %569 = vrot.lane.b32.xlu0 %v566, 127
          %v570 = vpop.permute.xlu0 %569
          %571 = vrot.lane.b32.xlu0 %v568, 127
          %v572 = vpop.permute.xlu0 %571
          %v575 = vadd.f32 %v555, %v570
          %v576 = vadd.f32 %v556, %v572
          %s577 = sld [smem:[#allocation10 + $0xf]]
          %s578 = sld [smem:[#allocation10 + $0x40]]
          %v579 = vstv %s577
          %v580 = vmul.f32 %v579, %v279
          %v581 = vmul.f32 %v579, %v280
          %v582 = vmul.f32 %v579, %v281
          %v586 = vrot.slane %v580, 2
          %v587 = vrot.slane %v581, 2
          %v588 = vsel %vm341, %v586, %v587
          %v589 = vrot.slane %v582, 2
          %v590 = vsel %vm341, %v587, %v589
          %591 = vrot.lane.b32.xlu0 %v588, 127
          %v592 = vpop.permute.xlu0 %591
          %593 = vrot.lane.b32.xlu0 %v590, 127
          %v594 = vpop.permute.xlu0 %593
          %v597 = vadd.f32 %v575, %v592
          %v598 = vadd.f32 %v576, %v594
          %v599 = vstv %s578
          %v600 = vmul.f32 %v599, %v282
          %v601 = vmul.f32 %v599, %v283
          %v602 = vmul.f32 %v599, %v284
          %v606 = vrot.slane %v600, 2
          %v607 = vrot.slane %v601, 2
          %v608 = vsel %vm341, %v606, %v607
          %v609 = vrot.slane %v602, 2
          %v610 = vsel %vm341, %v607, %v609
          %611 = vrot.lane.b32.xlu0 %v608, 127
          %v612 = vpop.permute.xlu0 %611
          %613 = vrot.lane.b32.xlu0 %v610, 127
          %v614 = vpop.permute.xlu0 %613
          %v617 = vadd.f32 %v597, %v612
          %v618 = vadd.f32 %v598, %v614
          %s619 = sld [smem:[#allocation10 + $0x16]]
          %s620 = sld [smem:[#allocation10 + $0x47]]
          %v621 = vstv %s619
          %v622 = vmul.f32 %v621, %v279
          %v623 = vmul.f32 %v621, %v280
          %v624 = vmul.f32 %v621, %v281
          %v628 = vrot.slane %v622, 3
          %v629 = vrot.slane %v623, 3
          %v630 = vsel %vm376, %v628, %v629
          %v631 = vrot.slane %v624, 3
          %v632 = vsel %vm376, %v629, %v631
          %633 = vrot.lane.b32.xlu0 %v630, 127
          %v634 = vpop.permute.xlu0 %633
          %635 = vrot.lane.b32.xlu0 %v632, 127
          %v636 = vpop.permute.xlu0 %635
          %v639 = vadd.f32 %v617, %v634
          %v640 = vadd.f32 %v618, %v636
          %v641 = vstv %s620
          %v642 = vmul.f32 %v641, %v282
          %v643 = vmul.f32 %v641, %v283
          %v644 = vmul.f32 %v641, %v284
          %v648 = vrot.slane %v642, 3
          %v649 = vrot.slane %v643, 3
          %v650 = vsel %vm376, %v648, %v649
          %v651 = vrot.slane %v644, 3
          %v652 = vsel %vm376, %v649, %v651
          %653 = vrot.lane.b32.xlu0 %v650, 127
          %v654 = vpop.permute.xlu0 %653
          %655 = vrot.lane.b32.xlu0 %v652, 127
          %v656 = vpop.permute.xlu0 %655
          %v659 = vadd.f32 %v639, %v654
          %v660 = vadd.f32 %v640, %v656
          %s661 = sld [smem:[#allocation10 + $0x1d]]
          %s662 = sld [smem:[#allocation10 + $0x4e]]
          %v663 = vstv %s661
          %v664 = vmul.f32 %v663, %v279
          %v665 = vmul.f32 %v663, %v280
          %v666 = vmul.f32 %v663, %v281
          %v670 = vrot.slane %v664, 4
          %v671 = vrot.slane %v665, 4
          %v672 = vsel %vm411, %v670, %v671
          %v673 = vrot.slane %v666, 4
          %v674 = vsel %vm411, %v671, %v673
          %675 = vrot.lane.b32.xlu0 %v672, 127
          %v676 = vpop.permute.xlu0 %675
          %677 = vrot.lane.b32.xlu0 %v674, 127
          %v678 = vpop.permute.xlu0 %677
          %v681 = vadd.f32 %v659, %v676
          %v682 = vadd.f32 %v660, %v678
          %v683 = vstv %s662
          %v684 = vmul.f32 %v683, %v282
          %v685 = vmul.f32 %v683, %v283
          %v686 = vmul.f32 %v683, %v284
          %v690 = vrot.slane %v684, 4
          %v691 = vrot.slane %v685, 4
          %v692 = vsel %vm411, %v690, %v691
          %v693 = vrot.slane %v686, 4
          %v694 = vsel %vm411, %v691, %v693
          %695 = vrot.lane.b32.xlu0 %v692, 127
          %v696 = vpop.permute.xlu0 %695
          %697 = vrot.lane.b32.xlu0 %v694, 127
          %v698 = vpop.permute.xlu0 %697
          %v701 = vadd.f32 %v681, %v696
          %v702 = vadd.f32 %v682, %v698
          %s703 = sld [smem:[#allocation10 + $0x24]]
          %s704 = sld [smem:[#allocation10 + $0x55]]
          %v705 = vstv %s703
          %v706 = vmul.f32 %v705, %v279
          %v707 = vmul.f32 %v705, %v280
          %v708 = vmul.f32 %v705, %v281
          %v712 = vrot.slane %v706, 5
          %v713 = vrot.slane %v707, 5
          %v714 = vsel %vm446, %v712, %v713
          %v715 = vrot.slane %v708, 5
          %v716 = vsel %vm446, %v713, %v715
          %717 = vrot.lane.b32.xlu0 %v714, 127
          %v718 = vpop.permute.xlu0 %717
          %719 = vrot.lane.b32.xlu0 %v716, 127
          %v720 = vpop.permute.xlu0 %719
          %v723 = vadd.f32 %v701, %v718
          %v724 = vadd.f32 %v702, %v720
          %v725 = vstv %s704
          %v726 = vmul.f32 %v725, %v282
          %v727 = vmul.f32 %v725, %v283
          %v728 = vmul.f32 %v725, %v284
          %v732 = vrot.slane %v726, 5
          %v733 = vrot.slane %v727, 5
          %v734 = vsel %vm446, %v732, %v733
          %v735 = vrot.slane %v728, 5
          %v736 = vsel %vm446, %v733, %v735
          %737 = vrot.lane.b32.xlu0 %v734, 127
          %v738 = vpop.permute.xlu0 %737
          %739 = vrot.lane.b32.xlu0 %v736, 127
          %v740 = vpop.permute.xlu0 %739
          %v743 = vadd.f32 %v723, %v738
          %v744 = vadd.f32 %v724, %v740
          %s745 = sld [smem:[#allocation10 + $0x2b]]
          %s746 = sld [smem:[#allocation10 + $0x5c]]
          %v747 = vstv %s745
          %v748 = vmul.f32 %v747, %v279
          %v749 = vmul.f32 %v747, %v280
          %v750 = vmul.f32 %v747, %v281
          %v754 = vrot.slane %v748, 6
          %v755 = vrot.slane %v749, 6
          %v756 = vsel %vm481, %v754, %v755
          %v757 = vrot.slane %v750, 6
          %v758 = vsel %vm481, %v755, %v757
          %759 = vrot.lane.b32.xlu0 %v756, 127
          %v760 = vpop.permute.xlu0 %759
          %761 = vrot.lane.b32.xlu0 %v758, 127
          %v762 = vpop.permute.xlu0 %761
          %v765 = vadd.f32 %v743, %v760
          %v766 = vadd.f32 %v744, %v762
          %v767 = vstv %s746
          %v768 = vmul.f32 %v767, %v282
          %v769 = vmul.f32 %v767, %v283
          %v770 = vmul.f32 %v767, %v284
          %v774 = vrot.slane %v768, 6
          %v775 = vrot.slane %v769, 6
          %v776 = vsel %vm481, %v774, %v775
          %v777 = vrot.slane %v770, 6
          %v778 = vsel %vm481, %v775, %v777
          %779 = vrot.lane.b32.xlu0 %v776, 127
          %v780 = vpop.permute.xlu0 %779
          %781 = vrot.lane.b32.xlu0 %v778, 127
          %v782 = vpop.permute.xlu0 %781
          %v785 = vadd.f32 %v765, %v780
          %v786 = vadd.f32 %v766, %v782
          %s787 = sld [smem:[#allocation10 + $0x2]]
          %s788 = sld [smem:[#allocation10 + $0x33]]
          %v789 = vstv %s787
          %v790 = vmul.f32 %v789, %v279
          %v791 = vmul.f32 %v789, %v280
          %794 = vrot.lane.b32.xlu0 %v790, 126
          %v795 = vpop.permute.xlu0 %794
          %796 = vrot.lane.b32.xlu0 %v791, 126
          %v797 = vpop.permute.xlu0 %796
          %v800 = vadd.f32 %v785, %v795
          %v801 = vadd.f32 %v786, %v797
          %v802 = vstv %s788
          %v803 = vmul.f32 %v802, %v282
          %v804 = vmul.f32 %v802, %v283
          %807 = vrot.lane.b32.xlu0 %v803, 126
          %v808 = vpop.permute.xlu0 %807
          %809 = vrot.lane.b32.xlu0 %v804, 126
          %v810 = vpop.permute.xlu0 %809
          %v813 = vadd.f32 %v800, %v808
          %v814 = vadd.f32 %v801, %v810
          %s815 = sld [smem:[#allocation10 + $0x9]]
          %s816 = sld [smem:[#allocation10 + $0x3a]]
          %v817 = vstv %s815
          %v818 = vmul.f32 %v817, %v279
          %v819 = vmul.f32 %v817, %v280
          %v820 = vmul.f32 %v817, %v281
          %v824 = vrot.slane %v818, 1
          %v825 = vrot.slane %v819, 1
          %v826 = vsel %vm306, %v824, %v825
          %v827 = vrot.slane %v820, 1
          %v828 = vsel %vm306, %v825, %v827
          %829 = vrot.lane.b32.xlu0 %v826, 126
          %v830 = vpop.permute.xlu0 %829
          %831 = vrot.lane.b32.xlu0 %v828, 126
          %v832 = vpop.permute.xlu0 %831
          %v835 = vadd.f32 %v813, %v830
          %v836 = vadd.f32 %v814, %v832
          %v837 = vstv %s816
          %v838 = vmul.f32 %v837, %v282
          %v839 = vmul.f32 %v837, %v283
          %v840 = vmul.f32 %v837, %v284
          %v844 = vrot.slane %v838, 1
          %v845 = vrot.slane %v839, 1
          %v846 = vsel %vm306, %v844, %v845
          %v847 = vrot.slane %v840, 1
          %v848 = vsel %vm306, %v845, %v847
          %849 = vrot.lane.b32.xlu0 %v846, 126
          %v850 = vpop.permute.xlu0 %849
          %851 = vrot.lane.b32.xlu0 %v848, 126
          %v852 = vpop.permute.xlu0 %851
          %v855 = vadd.f32 %v835, %v850
          %v856 = vadd.f32 %v836, %v852
          %s857 = sld [smem:[#allocation10 + $0x10]]
          %s858 = sld [smem:[#allocation10 + $0x41]]
          %v859 = vstv %s857
          %v860 = vmul.f32 %v859, %v279
          %v861 = vmul.f32 %v859, %v280
          %v862 = vmul.f32 %v859, %v281
          %v866 = vrot.slane %v860, 2
          %v867 = vrot.slane %v861, 2
          %v868 = vsel %vm341, %v866, %v867
          %v869 = vrot.slane %v862, 2
          %v870 = vsel %vm341, %v867, %v869
          %871 = vrot.lane.b32.xlu0 %v868, 126
          %v872 = vpop.permute.xlu0 %871
          %873 = vrot.lane.b32.xlu0 %v870, 126
          %v874 = vpop.permute.xlu0 %873
          %v877 = vadd.f32 %v855, %v872
          %v878 = vadd.f32 %v856, %v874
          %v879 = vstv %s858
          %v880 = vmul.f32 %v879, %v282
          %v881 = vmul.f32 %v879, %v283
          %v882 = vmul.f32 %v879, %v284
          %v886 = vrot.slane %v880, 2
          %v887 = vrot.slane %v881, 2
          %v888 = vsel %vm341, %v886, %v887
          %v889 = vrot.slane %v882, 2
          %v890 = vsel %vm341, %v887, %v889
          %891 = vrot.lane.b32.xlu0 %v888, 126
          %v892 = vpop.permute.xlu0 %891
          %893 = vrot.lane.b32.xlu0 %v890, 126
          %v894 = vpop.permute.xlu0 %893
          %v897 = vadd.f32 %v877, %v892
          %v898 = vadd.f32 %v878, %v894
          %s899 = sld [smem:[#allocation10 + $0x17]]
          %s900 = sld [smem:[#allocation10 + $0x48]]
          %v901 = vstv %s899
          %v902 = vmul.f32 %v901, %v279
          %v903 = vmul.f32 %v901, %v280
          %v904 = vmul.f32 %v901, %v281
          %v908 = vrot.slane %v902, 3
          %v909 = vrot.slane %v903, 3
          %v910 = vsel %vm376, %v908, %v909
          %v911 = vrot.slane %v904, 3
          %v912 = vsel %vm376, %v909, %v911
          %913 = vrot.lane.b32.xlu0 %v910, 126
          %v914 = vpop.permute.xlu0 %913
          %915 = vrot.lane.b32.xlu0 %v912, 126
          %v916 = vpop.permute.xlu0 %915
          %v919 = vadd.f32 %v897, %v914
          %v920 = vadd.f32 %v898, %v916
          %v921 = vstv %s900
          %v922 = vmul.f32 %v921, %v282
          %v923 = vmul.f32 %v921, %v283
          %v924 = vmul.f32 %v921, %v284
          %v928 = vrot.slane %v922, 3
          %v929 = vrot.slane %v923, 3
          %v930 = vsel %vm376, %v928, %v929
          %v931 = vrot.slane %v924, 3
          %v932 = vsel %vm376, %v929, %v931
          %933 = vrot.lane.b32.xlu0 %v930, 126
          %v934 = vpop.permute.xlu0 %933
          %935 = vrot.lane.b32.xlu0 %v932, 126
          %v936 = vpop.permute.xlu0 %935
          %v939 = vadd.f32 %v919, %v934
          %v940 = vadd.f32 %v920, %v936
          %s941 = sld [smem:[#allocation10 + $0x1e]]
          %s942 = sld [smem:[#allocation10 + $0x4f]]
          %v943 = vstv %s941
          %v944 = vmul.f32 %v943, %v279
          %v945 = vmul.f32 %v943, %v280
          %v946 = vmul.f32 %v943, %v281
          %v950 = vrot.slane %v944, 4
          %v951 = vrot.slane %v945, 4
          %v952 = vsel %vm411, %v950, %v951
          %v953 = vrot.slane %v946, 4
          %v954 = vsel %vm411, %v951, %v953
          %955 = vrot.lane.b32.xlu0 %v952, 126
          %v956 = vpop.permute.xlu0 %955
          %957 = vrot.lane.b32.xlu0 %v954, 126
          %v958 = vpop.permute.xlu0 %957
          %v961 = vadd.f32 %v939, %v956
          %v962 = vadd.f32 %v940, %v958
          %v963 = vstv %s942
          %v964 = vmul.f32 %v963, %v282
          %v965 = vmul.f32 %v963, %v283
          %v966 = vmul.f32 %v963, %v284
          %v970 = vrot.slane %v964, 4
          %v971 = vrot.slane %v965, 4
          %v972 = vsel %vm411, %v970, %v971
          %v973 = vrot.slane %v966, 4
          %v974 = vsel %vm411, %v971, %v973
          %975 = vrot.lane.b32.xlu0 %v972, 126
          %v976 = vpop.permute.xlu0 %975
          %977 = vrot.lane.b32.xlu0 %v974, 126
          %v978 = vpop.permute.xlu0 %977
          %v981 = vadd.f32 %v961, %v976
          %v982 = vadd.f32 %v962, %v978
          %s983 = sld [smem:[#allocation10 + $0x25]]
          %s984 = sld [smem:[#allocation10 + $0x56]]
          %v985 = vstv %s983
          %v986 = vmul.f32 %v985, %v279
          %v987 = vmul.f32 %v985, %v280
          %v988 = vmul.f32 %v985, %v281
          %v992 = vrot.slane %v986, 5
          %v993 = vrot.slane %v987, 5
          %v994 = vsel %vm446, %v992, %v993
          %v995 = vrot.slane %v988, 5
          %v996 = vsel %vm446, %v993, %v995
          %997 = vrot.lane.b32.xlu0 %v994, 126
          %v998 = vpop.permute.xlu0 %997
          %999 = vrot.lane.b32.xlu0 %v996, 126
          %v1000 = vpop.permute.xlu0 %999
          %v1003 = vadd.f32 %v981, %v998
          %v1004 = vadd.f32 %v982, %v1000
          %v1005 = vstv %s984
          %v1006 = vmul.f32 %v1005, %v282
          %v1007 = vmul.f32 %v1005, %v283
          %v1008 = vmul.f32 %v1005, %v284
          %v1012 = vrot.slane %v1006, 5
          %v1013 = vrot.slane %v1007, 5
          %v1014 = vsel %vm446, %v1012, %v1013
          %v1015 = vrot.slane %v1008, 5
          %v1016 = vsel %vm446, %v1013, %v1015
          %1017 = vrot.lane.b32.xlu0 %v1014, 126
          %v1018 = vpop.permute.xlu0 %1017
          %1019 = vrot.lane.b32.xlu0 %v1016, 126
          %v1020 = vpop.permute.xlu0 %1019
          %v1023 = vadd.f32 %v1003, %v1018
          %v1024 = vadd.f32 %v1004, %v1020
          %s1025 = sld [smem:[#allocation10 + $0x2c]]
          %s1026 = sld [smem:[#allocation10 + $0x5d]]
          %v1027 = vstv %s1025
          %v1028 = vmul.f32 %v1027, %v279
          %v1029 = vmul.f32 %v1027, %v280
          %v1030 = vmul.f32 %v1027, %v281
          %v1034 = vrot.slane %v1028, 6
          %v1035 = vrot.slane %v1029, 6
          %v1036 = vsel %vm481, %v1034, %v1035
          %v1037 = vrot.slane %v1030, 6
          %v1038 = vsel %vm481, %v1035, %v1037
          %1039 = vrot.lane.b32.xlu0 %v1036, 126
          %v1040 = vpop.permute.xlu0 %1039
          %1041 = vrot.lane.b32.xlu0 %v1038, 126
          %v1042 = vpop.permute.xlu0 %1041
          %v1045 = vadd.f32 %v1023, %v1040
          %v1046 = vadd.f32 %v1024, %v1042
          %v1047 = vstv %s1026
          %v1048 = vmul.f32 %v1047, %v282
          %v1049 = vmul.f32 %v1047, %v283
          %v1050 = vmul.f32 %v1047, %v284
          %v1054 = vrot.slane %v1048, 6
          %v1055 = vrot.slane %v1049, 6
          %v1056 = vsel %vm481, %v1054, %v1055
          %v1057 = vrot.slane %v1050, 6
          %v1058 = vsel %vm481, %v1055, %v1057
          %1059 = vrot.lane.b32.xlu0 %v1056, 126
          %v1060 = vpop.permute.xlu0 %1059
          %1061 = vrot.lane.b32.xlu0 %v1058, 126
          %v1062 = vpop.permute.xlu0 %1061
          %v1065 = vadd.f32 %v1045, %v1060
          %v1066 = vadd.f32 %v1046, %v1062
          %s1067 = sld [smem:[#allocation10 + $0x3]]
          %s1068 = sld [smem:[#allocation10 + $0x34]]
          %v1069 = vstv %s1067
          %v1070 = vmul.f32 %v1069, %v279
          %v1071 = vmul.f32 %v1069, %v280
          %1074 = vrot.lane.b32.xlu0 %v1070, 125
          %v1075 = vpop.permute.xlu0 %1074
          %1076 = vrot.lane.b32.xlu0 %v1071, 125
          %v1077 = vpop.permute.xlu0 %1076
          %v1080 = vadd.f32 %v1065, %v1075
          %v1081 = vadd.f32 %v1066, %v1077
          %v1082 = vstv %s1068
          %v1083 = vmul.f32 %v1082, %v282
          %v1084 = vmul.f32 %v1082, %v283
          %1087 = vrot.lane.b32.xlu0 %v1083, 125
          %v1088 = vpop.permute.xlu0 %1087
          %1089 = vrot.lane.b32.xlu0 %v1084, 125
          %v1090 = vpop.permute.xlu0 %1089
          %v1093 = vadd.f32 %v1080, %v1088
          %v1094 = vadd.f32 %v1081, %v1090
          %s1095 = sld [smem:[#allocation10 + $0xa]]
          %s1096 = sld [smem:[#allocation10 + $0x3b]]
          %v1097 = vstv %s1095
          %v1098 = vmul.f32 %v1097, %v279
          %v1099 = vmul.f32 %v1097, %v280
          %v1100 = vmul.f32 %v1097, %v281
          %v1104 = vrot.slane %v1098, 1
          %v1105 = vrot.slane %v1099, 1
          %v1106 = vsel %vm306, %v1104, %v1105
          %v1107 = vrot.slane %v1100, 1
          %v1108 = vsel %vm306, %v1105, %v1107
          %1109 = vrot.lane.b32.xlu0 %v1106, 125
          %v1110 = vpop.permute.xlu0 %1109
          %1111 = vrot.lane.b32.xlu0 %v1108, 125
          %v1112 = vpop.permute.xlu0 %1111
          %v1115 = vadd.f32 %v1093, %v1110
          %v1116 = vadd.f32 %v1094, %v1112
          %v1117 = vstv %s1096
          %v1118 = vmul.f32 %v1117, %v282
          %v1119 = vmul.f32 %v1117, %v283
          %v1120 = vmul.f32 %v1117, %v284
          %v1124 = vrot.slane %v1118, 1
          %v1125 = vrot.slane %v1119, 1
          %v1126 = vsel %vm306, %v1124, %v1125
          %v1127 = vrot.slane %v1120, 1
          %v1128 = vsel %vm306, %v1125, %v1127
          %1129 = vrot.lane.b32.xlu0 %v1126, 125
          %v1130 = vpop.permute.xlu0 %1129
          %1131 = vrot.lane.b32.xlu0 %v1128, 125
          %v1132 = vpop.permute.xlu0 %1131
          %v1135 = vadd.f32 %v1115, %v1130
          %v1136 = vadd.f32 %v1116, %v1132
          %s1137 = sld [smem:[#allocation10 + $0x11]]
          %s1138 = sld [smem:[#allocation10 + $0x42]]
          %v1139 = vstv %s1137
          %v1140 = vmul.f32 %v1139, %v279
          %v1141 = vmul.f32 %v1139, %v280
          %v1142 = vmul.f32 %v1139, %v281
          %v1146 = vrot.slane %v1140, 2
          %v1147 = vrot.slane %v1141, 2
          %v1148 = vsel %vm341, %v1146, %v1147
          %v1149 = vrot.slane %v1142, 2
          %v1150 = vsel %vm341, %v1147, %v1149
          %1151 = vrot.lane.b32.xlu0 %v1148, 125
          %v1152 = vpop.permute.xlu0 %1151
          %1153 = vrot.lane.b32.xlu0 %v1150, 125
          %v1154 = vpop.permute.xlu0 %1153
          %v1157 = vadd.f32 %v1135, %v1152
          %v1158 = vadd.f32 %v1136, %v1154
          %v1159 = vstv %s1138
          %v1160 = vmul.f32 %v1159, %v282
          %v1161 = vmul.f32 %v1159, %v283
          %v1162 = vmul.f32 %v1159, %v284
          %v1166 = vrot.slane %v1160, 2
          %v1167 = vrot.slane %v1161, 2
          %v1168 = vsel %vm341, %v1166, %v1167
          %v1169 = vrot.slane %v1162, 2
          %v1170 = vsel %vm341, %v1167, %v1169
          %1171 = vrot.lane.b32.xlu0 %v1168, 125
          %v1172 = vpop.permute.xlu0 %1171
          %1173 = vrot.lane.b32.xlu0 %v1170, 125
          %v1174 = vpop.permute.xlu0 %1173
          %v1177 = vadd.f32 %v1157, %v1172
          %v1178 = vadd.f32 %v1158, %v1174
          %s1179 = sld [smem:[#allocation10 + $0x18]]
          %s1180 = sld [smem:[#allocation10 + $0x49]]
          %v1181 = vstv %s1179
          %v1182 = vmul.f32 %v1181, %v279
          %v1183 = vmul.f32 %v1181, %v280
          %v1184 = vmul.f32 %v1181, %v281
          %v1188 = vrot.slane %v1182, 3
          %v1189 = vrot.slane %v1183, 3
          %v1190 = vsel %vm376, %v1188, %v1189
          %v1191 = vrot.slane %v1184, 3
          %v1192 = vsel %vm376, %v1189, %v1191
          %1193 = vrot.lane.b32.xlu0 %v1190, 125
          %v1194 = vpop.permute.xlu0 %1193
          %1195 = vrot.lane.b32.xlu0 %v1192, 125
          %v1196 = vpop.permute.xlu0 %1195
          %v1199 = vadd.f32 %v1177, %v1194
          %v1200 = vadd.f32 %v1178, %v1196
          %v1201 = vstv %s1180
          %v1202 = vmul.f32 %v1201, %v282
          %v1203 = vmul.f32 %v1201, %v283
          %v1204 = vmul.f32 %v1201, %v284
          %v1208 = vrot.slane %v1202, 3
          %v1209 = vrot.slane %v1203, 3
          %v1210 = vsel %vm376, %v1208, %v1209
          %v1211 = vrot.slane %v1204, 3
          %v1212 = vsel %vm376, %v1209, %v1211
          %1213 = vrot.lane.b32.xlu0 %v1210, 125
          %v1214 = vpop.permute.xlu0 %1213
          %1215 = vrot.lane.b32.xlu0 %v1212, 125
          %v1216 = vpop.permute.xlu0 %1215
          %v1219 = vadd.f32 %v1199, %v1214
          %v1220 = vadd.f32 %v1200, %v1216
          %s1221 = sld [smem:[#allocation10 + $0x1f]]
          %s1222 = sld [smem:[#allocation10 + $0x50]]
          %v1223 = vstv %s1221
          %v1224 = vmul.f32 %v1223, %v279
          %v1225 = vmul.f32 %v1223, %v280
          %v1226 = vmul.f32 %v1223, %v281
          %v1230 = vrot.slane %v1224, 4
          %v1231 = vrot.slane %v1225, 4
          %v1232 = vsel %vm411, %v1230, %v1231
          %v1233 = vrot.slane %v1226, 4
          %v1234 = vsel %vm411, %v1231, %v1233
          %1235 = vrot.lane.b32.xlu0 %v1232, 125
          %v1236 = vpop.permute.xlu0 %1235
          %1237 = vrot.lane.b32.xlu0 %v1234, 125
          %v1238 = vpop.permute.xlu0 %1237
          %v1241 = vadd.f32 %v1219, %v1236
          %v1242 = vadd.f32 %v1220, %v1238
          %v1243 = vstv %s1222
          %v1244 = vmul.f32 %v1243, %v282
          %v1245 = vmul.f32 %v1243, %v283
          %v1246 = vmul.f32 %v1243, %v284
          %v1250 = vrot.slane %v1244, 4
          %v1251 = vrot.slane %v1245, 4
          %v1252 = vsel %vm411, %v1250, %v1251
          %v1253 = vrot.slane %v1246, 4
          %v1254 = vsel %vm411, %v1251, %v1253
          %1255 = vrot.lane.b32.xlu0 %v1252, 125
          %v1256 = vpop.permute.xlu0 %1255
          %1257 = vrot.lane.b32.xlu0 %v1254, 125
          %v1258 = vpop.permute.xlu0 %1257
          %v1261 = vadd.f32 %v1241, %v1256
          %v1262 = vadd.f32 %v1242, %v1258
          %s1263 = sld [smem:[#allocation10 + $0x26]]
          %s1264 = sld [smem:[#allocation10 + $0x57]]
          %v1265 = vstv %s1263
          %v1266 = vmul.f32 %v1265, %v279
          %v1267 = vmul.f32 %v1265, %v280
          %v1268 = vmul.f32 %v1265, %v281
          %v1272 = vrot.slane %v1266, 5
          %v1273 = vrot.slane %v1267, 5
          %v1274 = vsel %vm446, %v1272, %v1273
          %v1275 = vrot.slane %v1268, 5
          %v1276 = vsel %vm446, %v1273, %v1275
          %1277 = vrot.lane.b32.xlu0 %v1274, 125
          %v1278 = vpop.permute.xlu0 %1277
          %1279 = vrot.lane.b32.xlu0 %v1276, 125
          %v1280 = vpop.permute.xlu0 %1279
          %v1283 = vadd.f32 %v1261, %v1278
          %v1284 = vadd.f32 %v1262, %v1280
          %v1285 = vstv %s1264
          %v1286 = vmul.f32 %v1285, %v282
          %v1287 = vmul.f32 %v1285, %v283
          %v1288 = vmul.f32 %v1285, %v284
          %v1292 = vrot.slane %v1286, 5
          %v1293 = vrot.slane %v1287, 5
          %v1294 = vsel %vm446, %v1292, %v1293
          %v1295 = vrot.slane %v1288, 5
          %v1296 = vsel %vm446, %v1293, %v1295
          %1297 = vrot.lane.b32.xlu0 %v1294, 125
          %v1298 = vpop.permute.xlu0 %1297
          %1299 = vrot.lane.b32.xlu0 %v1296, 125
          %v1300 = vpop.permute.xlu0 %1299
          %v1303 = vadd.f32 %v1283, %v1298
          %v1304 = vadd.f32 %v1284, %v1300
          %s1305 = sld [smem:[#allocation10 + $0x2d]]
          %s1306 = sld [smem:[#allocation10 + $0x5e]]
          %v1307 = vstv %s1305
          %v1308 = vmul.f32 %v1307, %v279
          %v1309 = vmul.f32 %v1307, %v280
          %v1310 = vmul.f32 %v1307, %v281
          %v1314 = vrot.slane %v1308, 6
          %v1315 = vrot.slane %v1309, 6
          %v1316 = vsel %vm481, %v1314, %v1315
          %v1317 = vrot.slane %v1310, 6
          %v1318 = vsel %vm481, %v1315, %v1317
          %1319 = vrot.lane.b32.xlu0 %v1316, 125
          %v1320 = vpop.permute.xlu0 %1319
          %1321 = vrot.lane.b32.xlu0 %v1318, 125
          %v1322 = vpop.permute.xlu0 %1321
          %v1325 = vadd.f32 %v1303, %v1320
          %v1326 = vadd.f32 %v1304, %v1322
          %v1327 = vstv %s1306
          %v1328 = vmul.f32 %v1327, %v282
          %v1329 = vmul.f32 %v1327, %v283
          %v1330 = vmul.f32 %v1327, %v284
          %v1334 = vrot.slane %v1328, 6
          %v1335 = vrot.slane %v1329, 6
          %v1336 = vsel %vm481, %v1334, %v1335
          %v1337 = vrot.slane %v1330, 6
          %v1338 = vsel %vm481, %v1335, %v1337
          %1339 = vrot.lane.b32.xlu0 %v1336, 125
          %v1340 = vpop.permute.xlu0 %1339
          %1341 = vrot.lane.b32.xlu0 %v1338, 125
          %v1342 = vpop.permute.xlu0 %1341
          %v1345 = vadd.f32 %v1325, %v1340
          %v1346 = vadd.f32 %v1326, %v1342
          %s1347 = sld [smem:[#allocation10 + $0x4]]
          %s1348 = sld [smem:[#allocation10 + $0x35]]
          %v1349 = vstv %s1347
          %v1350 = vmul.f32 %v1349, %v279
          %v1351 = vmul.f32 %v1349, %v280
          %1354 = vrot.lane.b32.xlu0 %v1350, 124
          %v1355 = vpop.permute.xlu0 %1354
          %1356 = vrot.lane.b32.xlu0 %v1351, 124
          %v1357 = vpop.permute.xlu0 %1356
          %v1360 = vadd.f32 %v1345, %v1355
          %v1361 = vadd.f32 %v1346, %v1357
          %v1362 = vstv %s1348
          %v1363 = vmul.f32 %v1362, %v282
          %v1364 = vmul.f32 %v1362, %v283
          %1367 = vrot.lane.b32.xlu0 %v1363, 124
          %v1368 = vpop.permute.xlu0 %1367
          %1369 = vrot.lane.b32.xlu0 %v1364, 124
          %v1370 = vpop.permute.xlu0 %1369
          %v1373 = vadd.f32 %v1360, %v1368
          %v1374 = vadd.f32 %v1361, %v1370
          %s1375 = sld [smem:[#allocation10 + $0xb]]
          %s1376 = sld [smem:[#allocation10 + $0x3c]]
          %v1377 = vstv %s1375
          %v1378 = vmul.f32 %v1377, %v279
          %v1379 = vmul.f32 %v1377, %v280
          %v1380 = vmul.f32 %v1377, %v281
          %v1384 = vrot.slane %v1378, 1
          %v1385 = vrot.slane %v1379, 1
          %v1386 = vsel %vm306, %v1384, %v1385
          %v1387 = vrot.slane %v1380, 1
          %v1388 = vsel %vm306, %v1385, %v1387
          %1389 = vrot.lane.b32.xlu0 %v1386, 124
          %v1390 = vpop.permute.xlu0 %1389
          %1391 = vrot.lane.b32.xlu0 %v1388, 124
          %v1392 = vpop.permute.xlu0 %1391
          %v1395 = vadd.f32 %v1373, %v1390
          %v1396 = vadd.f32 %v1374, %v1392
          %v1397 = vstv %s1376
          %v1398 = vmul.f32 %v1397, %v282
          %v1399 = vmul.f32 %v1397, %v283
          %v1400 = vmul.f32 %v1397, %v284
          %v1404 = vrot.slane %v1398, 1
          %v1405 = vrot.slane %v1399, 1
          %v1406 = vsel %vm306, %v1404, %v1405
          %v1407 = vrot.slane %v1400, 1
          %v1408 = vsel %vm306, %v1405, %v1407
          %1409 = vrot.lane.b32.xlu0 %v1406, 124
          %v1410 = vpop.permute.xlu0 %1409
          %1411 = vrot.lane.b32.xlu0 %v1408, 124
          %v1412 = vpop.permute.xlu0 %1411
          %v1415 = vadd.f32 %v1395, %v1410
          %v1416 = vadd.f32 %v1396, %v1412
          %s1417 = sld [smem:[#allocation10 + $0x12]]
          %s1418 = sld [smem:[#allocation10 + $0x43]]
          %v1419 = vstv %s1417
          %v1420 = vmul.f32 %v1419, %v279
          %v1421 = vmul.f32 %v1419, %v280
          %v1422 = vmul.f32 %v1419, %v281
          %v1426 = vrot.slane %v1420, 2
          %v1427 = vrot.slane %v1421, 2
          %v1428 = vsel %vm341, %v1426, %v1427
          %v1429 = vrot.slane %v1422, 2
          %v1430 = vsel %vm341, %v1427, %v1429
          %1431 = vrot.lane.b32.xlu0 %v1428, 124
          %v1432 = vpop.permute.xlu0 %1431
          %1433 = vrot.lane.b32.xlu0 %v1430, 124
          %v1434 = vpop.permute.xlu0 %1433
          %v1437 = vadd.f32 %v1415, %v1432
          %v1438 = vadd.f32 %v1416, %v1434
          %v1439 = vstv %s1418
          %v1440 = vmul.f32 %v1439, %v282
          %v1441 = vmul.f32 %v1439, %v283
          %v1442 = vmul.f32 %v1439, %v284
          %v1446 = vrot.slane %v1440, 2
          %v1447 = vrot.slane %v1441, 2
          %v1448 = vsel %vm341, %v1446, %v1447
          %v1449 = vrot.slane %v1442, 2
          %v1450 = vsel %vm341, %v1447, %v1449
          %1451 = vrot.lane.b32.xlu0 %v1448, 124
          %v1452 = vpop.permute.xlu0 %1451
          %1453 = vrot.lane.b32.xlu0 %v1450, 124
          %v1454 = vpop.permute.xlu0 %1453
          %v1457 = vadd.f32 %v1437, %v1452
          %v1458 = vadd.f32 %v1438, %v1454
          %s1459 = sld [smem:[#allocation10 + $0x19]]
          %s1460 = sld [smem:[#allocation10 + $0x4a]]
          %v1461 = vstv %s1459
          %v1462 = vmul.f32 %v1461, %v279
          %v1463 = vmul.f32 %v1461, %v280
          %v1464 = vmul.f32 %v1461, %v281
          %v1468 = vrot.slane %v1462, 3
          %v1469 = vrot.slane %v1463, 3
          %v1470 = vsel %vm376, %v1468, %v1469
          %v1471 = vrot.slane %v1464, 3
          %v1472 = vsel %vm376, %v1469, %v1471
          %1473 = vrot.lane.b32.xlu0 %v1470, 124
          %v1474 = vpop.permute.xlu0 %1473
          %1475 = vrot.lane.b32.xlu0 %v1472, 124
          %v1476 = vpop.permute.xlu0 %1475
          %v1479 = vadd.f32 %v1457, %v1474
          %v1480 = vadd.f32 %v1458, %v1476
          %v1481 = vstv %s1460
          %v1482 = vmul.f32 %v1481, %v282
          %v1483 = vmul.f32 %v1481, %v283
          %v1484 = vmul.f32 %v1481, %v284
          %v1488 = vrot.slane %v1482, 3
          %v1489 = vrot.slane %v1483, 3
          %v1490 = vsel %vm376, %v1488, %v1489
          %v1491 = vrot.slane %v1484, 3
          %v1492 = vsel %vm376, %v1489, %v1491
          %1493 = vrot.lane.b32.xlu0 %v1490, 124
          %v1494 = vpop.permute.xlu0 %1493
          %1495 = vrot.lane.b32.xlu0 %v1492, 124
          %v1496 = vpop.permute.xlu0 %1495
          %v1499 = vadd.f32 %v1479, %v1494
          %v1500 = vadd.f32 %v1480, %v1496
          %s1501 = sld [smem:[#allocation10 + $0x20]]
          %s1502 = sld [smem:[#allocation10 + $0x51]]
          %v1503 = vstv %s1501
          %v1504 = vmul.f32 %v1503, %v279
          %v1505 = vmul.f32 %v1503, %v280
          %v1506 = vmul.f32 %v1503, %v281
          %v1510 = vrot.slane %v1504, 4
          %v1511 = vrot.slane %v1505, 4
          %v1512 = vsel %vm411, %v1510, %v1511
          %v1513 = vrot.slane %v1506, 4
          %v1514 = vsel %vm411, %v1511, %v1513
          %1515 = vrot.lane.b32.xlu0 %v1512, 124
          %v1516 = vpop.permute.xlu0 %1515
          %1517 = vrot.lane.b32.xlu0 %v1514, 124
          %v1518 = vpop.permute.xlu0 %1517
          %v1521 = vadd.f32 %v1499, %v1516
          %v1522 = vadd.f32 %v1500, %v1518
          %v1523 = vstv %s1502
          %v1524 = vmul.f32 %v1523, %v282
          %v1525 = vmul.f32 %v1523, %v283
          %v1526 = vmul.f32 %v1523, %v284
          %v1530 = vrot.slane %v1524, 4
          %v1531 = vrot.slane %v1525, 4
          %v1532 = vsel %vm411, %v1530, %v1531
          %v1533 = vrot.slane %v1526, 4
          %v1534 = vsel %vm411, %v1531, %v1533
          %1535 = vrot.lane.b32.xlu0 %v1532, 124
          %v1536 = vpop.permute.xlu0 %1535
          %1537 = vrot.lane.b32.xlu0 %v1534, 124
          %v1538 = vpop.permute.xlu0 %1537
          %v1541 = vadd.f32 %v1521, %v1536
          %v1542 = vadd.f32 %v1522, %v1538
          %s1543 = sld [smem:[#allocation10 + $0x27]]
          %s1544 = sld [smem:[#allocation10 + $0x58]]
          %v1545 = vstv %s1543
          %v1546 = vmul.f32 %v1545, %v279
          %v1547 = vmul.f32 %v1545, %v280
          %v1548 = vmul.f32 %v1545, %v281
          %v1552 = vrot.slane %v1546, 5
          %v1553 = vrot.slane %v1547, 5
          %v1554 = vsel %vm446, %v1552, %v1553
          %v1555 = vrot.slane %v1548, 5
          %v1556 = vsel %vm446, %v1553, %v1555
          %1557 = vrot.lane.b32.xlu0 %v1554, 124
          %v1558 = vpop.permute.xlu0 %1557
          %1559 = vrot.lane.b32.xlu0 %v1556, 124
          %v1560 = vpop.permute.xlu0 %1559
          %v1563 = vadd.f32 %v1541, %v1558
          %v1564 = vadd.f32 %v1542, %v1560
          %v1565 = vstv %s1544
          %v1566 = vmul.f32 %v1565, %v282
          %v1567 = vmul.f32 %v1565, %v283
          %v1568 = vmul.f32 %v1565, %v284
          %v1572 = vrot.slane %v1566, 5
          %v1573 = vrot.slane %v1567, 5
          %v1574 = vsel %vm446, %v1572, %v1573
          %v1575 = vrot.slane %v1568, 5
          %v1576 = vsel %vm446, %v1573, %v1575
          %1577 = vrot.lane.b32.xlu0 %v1574, 124
          %v1578 = vpop.permute.xlu0 %1577
          %1579 = vrot.lane.b32.xlu0 %v1576, 124
          %v1580 = vpop.permute.xlu0 %1579
          %v1583 = vadd.f32 %v1563, %v1578
          %v1584 = vadd.f32 %v1564, %v1580
          %s1585 = sld [smem:[#allocation10 + $0x2e]]
          %s1586 = sld [smem:[#allocation10 + $0x5f]]
          %v1587 = vstv %s1585
          %v1588 = vmul.f32 %v1587, %v279
          %v1589 = vmul.f32 %v1587, %v280
          %v1590 = vmul.f32 %v1587, %v281
          %v1594 = vrot.slane %v1588, 6
          %v1595 = vrot.slane %v1589, 6
          %v1596 = vsel %vm481, %v1594, %v1595
          %v1597 = vrot.slane %v1590, 6
          %v1598 = vsel %vm481, %v1595, %v1597
          %1599 = vrot.lane.b32.xlu0 %v1596, 124
          %v1600 = vpop.permute.xlu0 %1599
          %1601 = vrot.lane.b32.xlu0 %v1598, 124
          %v1602 = vpop.permute.xlu0 %1601
          %v1605 = vadd.f32 %v1583, %v1600
          %v1606 = vadd.f32 %v1584, %v1602
          %v1607 = vstv %s1586
          %v1608 = vmul.f32 %v1607, %v282
          %v1609 = vmul.f32 %v1607, %v283
          %v1610 = vmul.f32 %v1607, %v284
          %v1614 = vrot.slane %v1608, 6
          %v1615 = vrot.slane %v1609, 6
          %v1616 = vsel %vm481, %v1614, %v1615
          %v1617 = vrot.slane %v1610, 6
          %v1618 = vsel %vm481, %v1615, %v1617
          %1619 = vrot.lane.b32.xlu0 %v1616, 124
          %v1620 = vpop.permute.xlu0 %1619
          %1621 = vrot.lane.b32.xlu0 %v1618, 124
          %v1622 = vpop.permute.xlu0 %1621
          %v1625 = vadd.f32 %v1605, %v1620
          %v1626 = vadd.f32 %v1606, %v1622
          %s1627 = sld [smem:[#allocation10 + $0x5]]
          %s1628 = sld [smem:[#allocation10 + $0x36]]
          %v1629 = vstv %s1627
          %v1630 = vmul.f32 %v1629, %v279
          %v1631 = vmul.f32 %v1629, %v280
          %1634 = vrot.lane.b32.xlu0 %v1630, 123
          %v1635 = vpop.permute.xlu0 %1634
          %1636 = vrot.lane.b32.xlu0 %v1631, 123
          %v1637 = vpop.permute.xlu0 %1636
          %v1640 = vadd.f32 %v1625, %v1635
          %v1641 = vadd.f32 %v1626, %v1637
          %v1642 = vstv %s1628
          %v1643 = vmul.f32 %v1642, %v282
          %v1644 = vmul.f32 %v1642, %v283
          %1647 = vrot.lane.b32.xlu0 %v1643, 123
          %v1648 = vpop.permute.xlu0 %1647
          %1649 = vrot.lane.b32.xlu0 %v1644, 123
          %v1650 = vpop.permute.xlu0 %1649
          %v1653 = vadd.f32 %v1640, %v1648
          %v1654 = vadd.f32 %v1641, %v1650
          %s1655 = sld [smem:[#allocation10 + $0xc]]
          %s1656 = sld [smem:[#allocation10 + $0x3d]]
          %v1657 = vstv %s1655
          %v1658 = vmul.f32 %v1657, %v279
          %v1659 = vmul.f32 %v1657, %v280
          %v1660 = vmul.f32 %v1657, %v281
          %v1664 = vrot.slane %v1658, 1
          %v1665 = vrot.slane %v1659, 1
          %v1666 = vsel %vm306, %v1664, %v1665
          %v1667 = vrot.slane %v1660, 1
          %v1668 = vsel %vm306, %v1665, %v1667
          %1669 = vrot.lane.b32.xlu0 %v1666, 123
          %v1670 = vpop.permute.xlu0 %1669
          %1671 = vrot.lane.b32.xlu0 %v1668, 123
          %v1672 = vpop.permute.xlu0 %1671
          %v1675 = vadd.f32 %v1653, %v1670
          %v1676 = vadd.f32 %v1654, %v1672
          %v1677 = vstv %s1656
          %v1678 = vmul.f32 %v1677, %v282
          %v1679 = vmul.f32 %v1677, %v283
          %v1680 = vmul.f32 %v1677, %v284
          %v1684 = vrot.slane %v1678, 1
          %v1685 = vrot.slane %v1679, 1
          %v1686 = vsel %vm306, %v1684, %v1685
          %v1687 = vrot.slane %v1680, 1
          %v1688 = vsel %vm306, %v1685, %v1687
          %1689 = vrot.lane.b32.xlu0 %v1686, 123
          %v1690 = vpop.permute.xlu0 %1689
          %1691 = vrot.lane.b32.xlu0 %v1688, 123
          %v1692 = vpop.permute.xlu0 %1691
          %v1695 = vadd.f32 %v1675, %v1690
          %v1696 = vadd.f32 %v1676, %v1692
          %s1697 = sld [smem:[#allocation10 + $0x13]]
          %s1698 = sld [smem:[#allocation10 + $0x44]]
          %v1699 = vstv %s1697
          %v1700 = vmul.f32 %v1699, %v279
          %v1701 = vmul.f32 %v1699, %v280
          %v1702 = vmul.f32 %v1699, %v281
          %v1706 = vrot.slane %v1700, 2
          %v1707 = vrot.slane %v1701, 2
          %v1708 = vsel %vm341, %v1706, %v1707
          %v1709 = vrot.slane %v1702, 2
          %v1710 = vsel %vm341, %v1707, %v1709
          %1711 = vrot.lane.b32.xlu0 %v1708, 123
          %v1712 = vpop.permute.xlu0 %1711
          %1713 = vrot.lane.b32.xlu0 %v1710, 123
          %v1714 = vpop.permute.xlu0 %1713
          %v1717 = vadd.f32 %v1695, %v1712
          %v1718 = vadd.f32 %v1696, %v1714
          %v1719 = vstv %s1698
          %v1720 = vmul.f32 %v1719, %v282
          %v1721 = vmul.f32 %v1719, %v283
          %v1722 = vmul.f32 %v1719, %v284
          %v1726 = vrot.slane %v1720, 2
          %v1727 = vrot.slane %v1721, 2
          %v1728 = vsel %vm341, %v1726, %v1727
          %v1729 = vrot.slane %v1722, 2
          %v1730 = vsel %vm341, %v1727, %v1729
          %1731 = vrot.lane.b32.xlu0 %v1728, 123
          %v1732 = vpop.permute.xlu0 %1731
          %1733 = vrot.lane.b32.xlu0 %v1730, 123
          %v1734 = vpop.permute.xlu0 %1733
          %v1737 = vadd.f32 %v1717, %v1732
          %v1738 = vadd.f32 %v1718, %v1734
          %s1739 = sld [smem:[#allocation10 + $0x1a]]
          %s1740 = sld [smem:[#allocation10 + $0x4b]]
          %v1741 = vstv %s1739
          %v1742 = vmul.f32 %v1741, %v279
          %v1743 = vmul.f32 %v1741, %v280
          %v1744 = vmul.f32 %v1741, %v281
          %v1748 = vrot.slane %v1742, 3
          %v1749 = vrot.slane %v1743, 3
          %v1750 = vsel %vm376, %v1748, %v1749
          %v1751 = vrot.slane %v1744, 3
          %v1752 = vsel %vm376, %v1749, %v1751
          %1753 = vrot.lane.b32.xlu0 %v1750, 123
          %v1754 = vpop.permute.xlu0 %1753
          %1755 = vrot.lane.b32.xlu0 %v1752, 123
          %v1756 = vpop.permute.xlu0 %1755
          %v1759 = vadd.f32 %v1737, %v1754
          %v1760 = vadd.f32 %v1738, %v1756
          %v1761 = vstv %s1740
          %v1762 = vmul.f32 %v1761, %v282
          %v1763 = vmul.f32 %v1761, %v283
          %v1764 = vmul.f32 %v1761, %v284
          %v1768 = vrot.slane %v1762, 3
          %v1769 = vrot.slane %v1763, 3
          %v1770 = vsel %vm376, %v1768, %v1769
          %v1771 = vrot.slane %v1764, 3
          %v1772 = vsel %vm376, %v1769, %v1771
          %1773 = vrot.lane.b32.xlu0 %v1770, 123
          %v1774 = vpop.permute.xlu0 %1773
          %1775 = vrot.lane.b32.xlu0 %v1772, 123
          %v1776 = vpop.permute.xlu0 %1775
          %v1779 = vadd.f32 %v1759, %v1774
          %v1780 = vadd.f32 %v1760, %v1776
          %s1781 = sld [smem:[#allocation10 + $0x21]]
          %s1782 = sld [smem:[#allocation10 + $0x52]]
          %v1783 = vstv %s1781
          %v1784 = vmul.f32 %v1783, %v279
          %v1785 = vmul.f32 %v1783, %v280
          %v1786 = vmul.f32 %v1783, %v281
          %v1790 = vrot.slane %v1784, 4
          %v1791 = vrot.slane %v1785, 4
          %v1792 = vsel %vm411, %v1790, %v1791
          %v1793 = vrot.slane %v1786, 4
          %v1794 = vsel %vm411, %v1791, %v1793
          %1795 = vrot.lane.b32.xlu0 %v1792, 123
          %v1796 = vpop.permute.xlu0 %1795
          %1797 = vrot.lane.b32.xlu0 %v1794, 123
          %v1798 = vpop.permute.xlu0 %1797
          %v1801 = vadd.f32 %v1779, %v1796
          %v1802 = vadd.f32 %v1780, %v1798
          %v1803 = vstv %s1782
          %v1804 = vmul.f32 %v1803, %v282
          %v1805 = vmul.f32 %v1803, %v283
          %v1806 = vmul.f32 %v1803, %v284
          %v1810 = vrot.slane %v1804, 4
          %v1811 = vrot.slane %v1805, 4
          %v1812 = vsel %vm411, %v1810, %v1811
          %v1813 = vrot.slane %v1806, 4
          %v1814 = vsel %vm411, %v1811, %v1813
          %1815 = vrot.lane.b32.xlu0 %v1812, 123
          %v1816 = vpop.permute.xlu0 %1815
          %1817 = vrot.lane.b32.xlu0 %v1814, 123
          %v1818 = vpop.permute.xlu0 %1817
          %v1821 = vadd.f32 %v1801, %v1816
          %v1822 = vadd.f32 %v1802, %v1818
          %s1823 = sld [smem:[#allocation10 + $0x28]]
          %s1824 = sld [smem:[#allocation10 + $0x59]]
          %v1825 = vstv %s1823
          %v1826 = vmul.f32 %v1825, %v279
          %v1827 = vmul.f32 %v1825, %v280
          %v1828 = vmul.f32 %v1825, %v281
          %v1832 = vrot.slane %v1826, 5
          %v1833 = vrot.slane %v1827, 5
          %v1834 = vsel %vm446, %v1832, %v1833
          %v1835 = vrot.slane %v1828, 5
          %v1836 = vsel %vm446, %v1833, %v1835
          %1837 = vrot.lane.b32.xlu0 %v1834, 123
          %v1838 = vpop.permute.xlu0 %1837
          %1839 = vrot.lane.b32.xlu0 %v1836, 123
          %v1840 = vpop.permute.xlu0 %1839
          %v1843 = vadd.f32 %v1821, %v1838
          %v1844 = vadd.f32 %v1822, %v1840
          %v1845 = vstv %s1824
          %v1846 = vmul.f32 %v1845, %v282
          %v1847 = vmul.f32 %v1845, %v283
          %v1848 = vmul.f32 %v1845, %v284
          %v1852 = vrot.slane %v1846, 5
          %v1853 = vrot.slane %v1847, 5
          %v1854 = vsel %vm446, %v1852, %v1853
          %v1855 = vrot.slane %v1848, 5
          %v1856 = vsel %vm446, %v1853, %v1855
          %1857 = vrot.lane.b32.xlu0 %v1854, 123
          %v1858 = vpop.permute.xlu0 %1857
          %1859 = vrot.lane.b32.xlu0 %v1856, 123
          %v1860 = vpop.permute.xlu0 %1859
          %v1863 = vadd.f32 %v1843, %v1858
          %v1864 = vadd.f32 %v1844, %v1860
          %s1865 = sld [smem:[#allocation10 + $0x2f]]
          %s1866 = sld [smem:[#allocation10 + $0x60]]
          %v1867 = vstv %s1865
          %v1868 = vmul.f32 %v1867, %v279
          %v1869 = vmul.f32 %v1867, %v280
          %v1870 = vmul.f32 %v1867, %v281
          %v1874 = vrot.slane %v1868, 6
          %v1875 = vrot.slane %v1869, 6
          %v1876 = vsel %vm481, %v1874, %v1875
          %v1877 = vrot.slane %v1870, 6
          %v1878 = vsel %vm481, %v1875, %v1877
          %1879 = vrot.lane.b32.xlu0 %v1876, 123
          %v1880 = vpop.permute.xlu0 %1879
          %1881 = vrot.lane.b32.xlu0 %v1878, 123
          %v1882 = vpop.permute.xlu0 %1881
          %v1885 = vadd.f32 %v1863, %v1880
          %v1886 = vadd.f32 %v1864, %v1882
          %v1887 = vstv %s1866
          %v1888 = vmul.f32 %v1887, %v282
          %v1889 = vmul.f32 %v1887, %v283
          %v1890 = vmul.f32 %v1887, %v284
          %v1894 = vrot.slane %v1888, 6
          %v1895 = vrot.slane %v1889, 6
          %v1896 = vsel %vm481, %v1894, %v1895
          %v1897 = vrot.slane %v1890, 6
          %v1898 = vsel %vm481, %v1895, %v1897
          %1899 = vrot.lane.b32.xlu0 %v1896, 123
          %v1900 = vpop.permute.xlu0 %1899
          %1901 = vrot.lane.b32.xlu0 %v1898, 123
          %v1902 = vpop.permute.xlu0 %1901
          %v1905 = vadd.f32 %v1885, %v1900
          %v1906 = vadd.f32 %v1886, %v1902
          %s1907 = sld [smem:[#allocation10 + $0x6]]
          %s1908 = sld [smem:[#allocation10 + $0x37]]
          %v1909 = vstv %s1907
          %v1910 = vmul.f32 %v1909, %v279
          %v1911 = vmul.f32 %v1909, %v280
          %1914 = vrot.lane.b32.xlu0 %v1910, 122
          %v1915 = vpop.permute.xlu0 %1914
          %1916 = vrot.lane.b32.xlu0 %v1911, 122
          %v1917 = vpop.permute.xlu0 %1916
          %v1920 = vadd.f32 %v1905, %v1915
          %v1921 = vadd.f32 %v1906, %v1917
          %v1922 = vstv %s1908
          %v1923 = vmul.f32 %v1922, %v282
          %v1924 = vmul.f32 %v1922, %v283
          %1927 = vrot.lane.b32.xlu0 %v1923, 122
          %v1928 = vpop.permute.xlu0 %1927
          %1929 = vrot.lane.b32.xlu0 %v1924, 122
          %v1930 = vpop.permute.xlu0 %1929
          %v1933 = vadd.f32 %v1920, %v1928
          %v1934 = vadd.f32 %v1921, %v1930
          %s1935 = sld [smem:[#allocation10 + $0xd]]
          %s1936 = sld [smem:[#allocation10 + $0x3e]]
          %v1937 = vstv %s1935
          %v1938 = vmul.f32 %v1937, %v279
          %v1939 = vmul.f32 %v1937, %v280
          %v1940 = vmul.f32 %v1937, %v281
          %v1944 = vrot.slane %v1938, 1
          %v1945 = vrot.slane %v1939, 1
          %v1946 = vsel %vm306, %v1944, %v1945
          %v1947 = vrot.slane %v1940, 1
          %v1948 = vsel %vm306, %v1945, %v1947
          %1949 = vrot.lane.b32.xlu0 %v1946, 122
          %v1950 = vpop.permute.xlu0 %1949
          %1951 = vrot.lane.b32.xlu0 %v1948, 122
          %v1952 = vpop.permute.xlu0 %1951
          %v1955 = vadd.f32 %v1933, %v1950
          %v1956 = vadd.f32 %v1934, %v1952
          %v1957 = vstv %s1936
          %v1958 = vmul.f32 %v1957, %v282
          %v1959 = vmul.f32 %v1957, %v283
          %v1960 = vmul.f32 %v1957, %v284
          %v1964 = vrot.slane %v1958, 1
          %v1965 = vrot.slane %v1959, 1
          %v1966 = vsel %vm306, %v1964, %v1965
          %v1967 = vrot.slane %v1960, 1
          %v1968 = vsel %vm306, %v1965, %v1967
          %1969 = vrot.lane.b32.xlu0 %v1966, 122
          %v1970 = vpop.permute.xlu0 %1969
          %1971 = vrot.lane.b32.xlu0 %v1968, 122
          %v1972 = vpop.permute.xlu0 %1971
          %v1975 = vadd.f32 %v1955, %v1970
          %v1976 = vadd.f32 %v1956, %v1972
          %s1977 = sld [smem:[#allocation10 + $0x14]]
          %s1978 = sld [smem:[#allocation10 + $0x45]]
          %v1979 = vstv %s1977
          %v1980 = vmul.f32 %v1979, %v279
          %v1981 = vmul.f32 %v1979, %v280
          %v1982 = vmul.f32 %v1979, %v281
          %v1986 = vrot.slane %v1980, 2
          %v1987 = vrot.slane %v1981, 2
          %v1988 = vsel %vm341, %v1986, %v1987
          %v1989 = vrot.slane %v1982, 2
          %v1990 = vsel %vm341, %v1987, %v1989
          %1991 = vrot.lane.b32.xlu0 %v1988, 122
          %v1992 = vpop.permute.xlu0 %1991
          %1993 = vrot.lane.b32.xlu0 %v1990, 122
          %v1994 = vpop.permute.xlu0 %1993
          %v1997 = vadd.f32 %v1975, %v1992
          %v1998 = vadd.f32 %v1976, %v1994
          %v1999 = vstv %s1978
          %v2000 = vmul.f32 %v1999, %v282
          %v2001 = vmul.f32 %v1999, %v283
          %v2002 = vmul.f32 %v1999, %v284
          %v2006 = vrot.slane %v2000, 2
          %v2007 = vrot.slane %v2001, 2
          %v2008 = vsel %vm341, %v2006, %v2007
          %v2009 = vrot.slane %v2002, 2
          %v2010 = vsel %vm341, %v2007, %v2009
          %2011 = vrot.lane.b32.xlu0 %v2008, 122
          %v2012 = vpop.permute.xlu0 %2011
          %2013 = vrot.lane.b32.xlu0 %v2010, 122
          %v2014 = vpop.permute.xlu0 %2013
          %v2017 = vadd.f32 %v1997, %v2012
          %v2018 = vadd.f32 %v1998, %v2014
          %s2019 = sld [smem:[#allocation10 + $0x1b]]
          %s2020 = sld [smem:[#allocation10 + $0x4c]]
          %v2021 = vstv %s2019
          %v2022 = vmul.f32 %v2021, %v279
          %v2023 = vmul.f32 %v2021, %v280
          %v2024 = vmul.f32 %v2021, %v281
          %v2028 = vrot.slane %v2022, 3
          %v2029 = vrot.slane %v2023, 3
          %v2030 = vsel %vm376, %v2028, %v2029
          %v2031 = vrot.slane %v2024, 3
          %v2032 = vsel %vm376, %v2029, %v2031
          %2033 = vrot.lane.b32.xlu0 %v2030, 122
          %v2034 = vpop.permute.xlu0 %2033
          %2035 = vrot.lane.b32.xlu0 %v2032, 122
          %v2036 = vpop.permute.xlu0 %2035
          %v2039 = vadd.f32 %v2017, %v2034
          %v2040 = vadd.f32 %v2018, %v2036
          %v2041 = vstv %s2020
          %v2042 = vmul.f32 %v2041, %v282
          %v2043 = vmul.f32 %v2041, %v283
          %v2044 = vmul.f32 %v2041, %v284
          %v2048 = vrot.slane %v2042, 3
          %v2049 = vrot.slane %v2043, 3
          %v2050 = vsel %vm376, %v2048, %v2049
          %v2051 = vrot.slane %v2044, 3
          %v2052 = vsel %vm376, %v2049, %v2051
          %2053 = vrot.lane.b32.xlu0 %v2050, 122
          %v2054 = vpop.permute.xlu0 %2053
          %2055 = vrot.lane.b32.xlu0 %v2052, 122
          %v2056 = vpop.permute.xlu0 %2055
          %v2059 = vadd.f32 %v2039, %v2054
          %v2060 = vadd.f32 %v2040, %v2056
          %s2061 = sld [smem:[#allocation10 + $0x22]]
          %s2062 = sld [smem:[#allocation10 + $0x53]]
          %v2063 = vstv %s2061
          %v2064 = vmul.f32 %v2063, %v279
          %v2065 = vmul.f32 %v2063, %v280
          %v2066 = vmul.f32 %v2063, %v281
          %v2070 = vrot.slane %v2064, 4
          %v2071 = vrot.slane %v2065, 4
          %v2072 = vsel %vm411, %v2070, %v2071
          %v2073 = vrot.slane %v2066, 4
          %v2074 = vsel %vm411, %v2071, %v2073
          %2075 = vrot.lane.b32.xlu0 %v2072, 122
          %v2076 = vpop.permute.xlu0 %2075
          %2077 = vrot.lane.b32.xlu0 %v2074, 122
          %v2078 = vpop.permute.xlu0 %2077
          %v2081 = vadd.f32 %v2059, %v2076
          %v2082 = vadd.f32 %v2060, %v2078
          %v2083 = vstv %s2062
          %v2084 = vmul.f32 %v2083, %v282
          %v2085 = vmul.f32 %v2083, %v283
          %v2086 = vmul.f32 %v2083, %v284
          %v2090 = vrot.slane %v2084, 4
          %v2091 = vrot.slane %v2085, 4
          %v2092 = vsel %vm411, %v2090, %v2091
          %v2093 = vrot.slane %v2086, 4
          %v2094 = vsel %vm411, %v2091, %v2093
          %2095 = vrot.lane.b32.xlu0 %v2092, 122
          %v2096 = vpop.permute.xlu0 %2095
          %2097 = vrot.lane.b32.xlu0 %v2094, 122
          %v2098 = vpop.permute.xlu0 %2097
          %v2101 = vadd.f32 %v2081, %v2096
          %v2102 = vadd.f32 %v2082, %v2098
          %s2103 = sld [smem:[#allocation10 + $0x29]]
          %s2104 = sld [smem:[#allocation10 + $0x5a]]
          %v2105 = vstv %s2103
          %v2106 = vmul.f32 %v2105, %v279
          %v2107 = vmul.f32 %v2105, %v280
          %v2108 = vmul.f32 %v2105, %v281
          %v2112 = vrot.slane %v2106, 5
          %v2113 = vrot.slane %v2107, 5
          %v2114 = vsel %vm446, %v2112, %v2113
          %v2115 = vrot.slane %v2108, 5
          %v2116 = vsel %vm446, %v2113, %v2115
          %2117 = vrot.lane.b32.xlu0 %v2114, 122
          %v2118 = vpop.permute.xlu0 %2117
          %2119 = vrot.lane.b32.xlu0 %v2116, 122
          %v2120 = vpop.permute.xlu0 %2119
          %v2123 = vadd.f32 %v2101, %v2118
          %v2124 = vadd.f32 %v2102, %v2120
          %v2125 = vstv %s2104
          %v2126 = vmul.f32 %v2125, %v282
          %v2127 = vmul.f32 %v2125, %v283
          %v2128 = vmul.f32 %v2125, %v284
          %v2132 = vrot.slane %v2126, 5
          %v2133 = vrot.slane %v2127, 5
          %v2134 = vsel %vm446, %v2132, %v2133
          %v2135 = vrot.slane %v2128, 5
          %v2136 = vsel %vm446, %v2133, %v2135
          %2137 = vrot.lane.b32.xlu0 %v2134, 122
          %v2138 = vpop.permute.xlu0 %2137
          %2139 = vrot.lane.b32.xlu0 %v2136, 122
          %v2140 = vpop.permute.xlu0 %2139
          %v2143 = vadd.f32 %v2123, %v2138
          %v2144 = vadd.f32 %v2124, %v2140
          %s2145 = sld [smem:[#allocation10 + $0x30]]
          %s2146 = sld [smem:[#allocation10 + $0x61]]
          %v2147 = vstv %s2145
          %v2148 = vmul.f32 %v2147, %v279
          %v2149 = vmul.f32 %v2147, %v280
          %v2150 = vmul.f32 %v2147, %v281
          %v2154 = vrot.slane %v2148, 6
          %v2155 = vrot.slane %v2149, 6
          %v2156 = vsel %vm481, %v2154, %v2155
          %v2157 = vrot.slane %v2150, 6
          %v2158 = vsel %vm481, %v2155, %v2157
          %2159 = vrot.lane.b32.xlu0 %v2156, 122
          %v2160 = vpop.permute.xlu0 %2159
          %2161 = vrot.lane.b32.xlu0 %v2158, 122
          %v2162 = vpop.permute.xlu0 %2161
          %v2165 = vadd.f32 %v2143, %v2160
          %v2166 = vadd.f32 %v2144, %v2162
          %v2167 = vstv %s2146
          %v2168 = vmul.f32 %v2167, %v282
          %v2169 = vmul.f32 %v2167, %v283
          %v2170 = vmul.f32 %v2167, %v284
          %v2174 = vrot.slane %v2168, 6
          %v2175 = vrot.slane %v2169, 6
          %v2176 = vsel %vm481, %v2174, %v2175
          %v2177 = vrot.slane %v2170, 6
          %v2178 = vsel %vm481, %v2175, %v2177
          %2179 = vrot.lane.b32.xlu0 %v2176, 122
          %v2180 = vpop.permute.xlu0 %2179
          %2181 = vrot.lane.b32.xlu0 %v2178, 122
          %v2182 = vpop.permute.xlu0 %2181
          %v2185 = vadd.f32 %v2165, %v2180
          %v2186 = vadd.f32 %v2166, %v2182
          %v2187 = vxor.u32 %v2185, 2147483648
          %v2188 = vxor.u32 %v2186, 2147483648
          %v2189 = vmul.f32 %v2187, 1.442695
          %v2190 = vpow.pop %v2189
          %v2191 = vmul.f32 %v2188, 1.442695
          %v2192 = vpow.pop %v2191
          %v2193 = vadd.f32 %v2190, 1.0
          %v2194 = vadd.f32 %v2192, 1.0
          %v2195 = vrcp.pop %v2193
          %v2196 = vmul.f32 1.0, %v2195
          %v2197 = vrcp.pop %v2194
          %v2198 = vmul.f32 1.0, %v2197
          %vm2199 = vcmask 130048
          %2200 = vst.msk [vmem:[%s192] sm:$0xff] %vm2199, %v2196
          %2201 = vst.msk [vmem:[%s192 + $0x8] sm:$0xff] %vm2199, %v2198
        $region48: #{tpu_custom_call.1} parent=27 // pred_fallthru
          _
        %s2202 = sand.u32 %s89, 1
        %s2203 = scalar_lea.sflag [#allocation8], %s2202
        %s2204 = sand.u32 %s89, 1
        %s2205 = smul.addr %s2204, 16
        %s2206 = scalar_lea.vmem [#allocation11], %s2205
        // Predicated region
        $region49: #{tpu_custom_call.1} parent=27 // pred_check
          %p2207 = pneg %p99
        $region50: #{tpu_custom_call.1} parent=27 // pred_check_branch
          %2209 = sbr.rel (%p2207) target = $region52
        $region51: #{tpu_custom_call.1} parent=27 // pred_region
          %s2211 = ssub.s32 256, 256
          %2212 = vsyncadd %s2203, %s2211
          %s2213 = smul.addr %s24, 2
          %s2214 = smul.addr %s2213, 128
          %s2215 = scalar_lea.hbm %s2, %s2214
          %s2216 = sshll.u32 %s2206, 4
          %s2217 = int_to_ptr.vmem [resolvable:$true] %s2216
          %2222 = dma.vmem_to_hbm [thread:$0]  %s2217, 256, %s2215, %s2203, 128, 128, 8
        $region52: #{tpu_custom_call.1} parent=27 // pred_fallthru
          _
      $region28: #{tpu_custom_call.1} parent=5 // pred_fallthru
        _
      %p2223 = scmp.le.s32.totalorder 2, %s15
      // Predicated region
      $region53: #{tpu_custom_call.1} parent=5 // pred_check
        %p2224 = pneg %p2223
      $region54: #{tpu_custom_call.1} parent=5 // pred_check_branch
        %2226 = sbr.rel (%p2224) target = $region56
      $region55: #{tpu_custom_call.1} parent=5 // pred_region
        %s2227 = ssub.s32 %s15, 2
        // Predicated region
        $region57: #{tpu_custom_call.1} parent=55 // pred_check
          %p2228 = pneg %p105
        $region58: #{tpu_custom_call.1} parent=55 // pred_check_branch
          %2230 = sbr.rel (%p2228) target = $region60
        $region59: #{tpu_custom_call.1} parent=55 // pred_region
          %s2231 = sand.u32 %s90, 1
          %s2232 = scalar_lea.sflag [#allocation8], %s2231
          %s2233 = sand.u32 %s90, 1
          %s2234 = smul.addr %s2233, 16
          %s2235 = scalar_lea.vmem [#allocation11], %s2234
          %2236 = dma.done %s2232, 256
        $region60: #{tpu_custom_call.1} parent=55 // pred_fallthru
          _
      $region56: #{tpu_custom_call.1} parent=5 // pred_fallthru
        _
    $region6: #{tpu_custom_call.1} parent=1 // loop_footer
      %s19 = sadd.s32 1, %s15
    $region7: #{tpu_custom_call.1} parent=1 // loop_footer_branch
      %14 = sbr.rel target = $region3
    $region8: #{tpu_custom_call.1} parent=1 // loop_exit
      _
    %2237 = vsyncpa [#allocation7], 1
    %s2238 = scalar_lea.sflag [#allocation7], 1
    %2239 = vsyncpa %s2238, 1
    %2240 = vsyncpa [#allocation8], 1
    %s2241 = scalar_lea.sflag [#allocation8], 1
    %2242 = vsyncpa %s2241, 1
    %2243 = vsyncpa [#allocation9], 1
    %s2244 = scalar_lea.sflag [#allocation9], 1
    %2245 = vsyncpa %s2244, 1

</llo_original>
